<compile_context>
chip_gen: v6e
topology: v6e:2x2x1
jax: 0.10.0
libtpu: 0.0.40
codegen_flags: <defaults>
</compile_context>

<pallas_src>
import functools

import numpy as np
import jax
import jax.numpy as jnp
from jax.experimental import pallas as pl
from jax.experimental.pallas import tpu as pltpu


def _make_compiler_params():
    # Per-chip VMEM budget: ~85% of physical VMEM, capped at 100 MiB.
    cap = 64 * 1024 * 1024
    try:
        info = pltpu.get_tpu_info()
        cap = int(getattr(info, "vmem_capacity_bytes", cap) or cap)
    except Exception:
        pass
    limit = min(int(cap * 0.85), 100 * 1024 * 1024)
    return pltpu.CompilerParams(
        dimension_semantics=("parallel",),
        vmem_limit_bytes=limit,
    )


_COMPILER_PARAMS = _make_compiler_params()


def _probe_single_buffer():
    """Return pl.Buffered(1) if this JAX/Mosaic accepts single-buffered grid-invariant
    operands on a real (compiled + executed) pallas_call, else None."""
    if not hasattr(pl, "Buffered"):
        return None
    try:
        mode = pl.Buffered(1)

        def _k(x_ref, w_ref, o_ref):
            o_ref[...] = x_ref[...] + w_ref[...]

        f = pl.pallas_call(
            _k,
            out_shape=jax.ShapeDtypeStruct((16, 128), jnp.float32),
            grid=(2,),
            in_specs=[
                pl.BlockSpec((8, 128), lambda i: (i, 0)),
                pl.BlockSpec((8, 128), lambda i: (0, 0), pipeline_mode=mode),
            ],
            out_specs=pl.BlockSpec((8, 128), lambda i: (i, 0)),
        )
        jax.block_until_ready(
            f(jnp.zeros((16, 128), jnp.float32), jnp.zeros((8, 128), jnp.float32)))
        return mode
    except Exception:
        return None


_WEIGHT_BUFFER_MODE = _probe_single_buffer()


def _const_spec(shape):
    """BlockSpec for a grid-invariant operand (weights / bias); single-buffered when
    supported so the big decoder weight blocks don't burn 2x VMEM."""
    nd = len(shape)
    index_map = lambda n, _nd=nd: (0,) * _nd
    if _WEIGHT_BUFFER_MODE is not None:
        return pl.BlockSpec(shape, index_map, pipeline_mode=_WEIGHT_BUFFER_MODE)
    return pl.BlockSpec(shape, index_map)


# ----------------------------------------------------------------------------
# Pallas kernels
# ----------------------------------------------------------------------------
def _conv3x3_row_kernel(x_ref, w_ref, b_ref, o_ref, *, relu):
    """Valid 3x3 conv, one batch element, one output row per loop step (M = Wo).

    x_ref: (1, H, W, Cin) bf16 ; w_ref: (9*Cin, Cout) bf16 (rows ordered (kh, kw, cin))
    b_ref: (1, Cout) f32       ; o_ref: (1, Ho, Wo, Cout) bf16
    The 3 input rows are each loaded once (aligned); the 9 taps become in-register
    shifted slices concatenated along lanes, so each output row is a SINGLE MXU dot
    with K = 9*Cin (vs 9 tiny K=Cin dots + add chain).
    """
    _, Ho, Wo, Cout = o_ref.shape
    bias = b_ref[...]                                       # (1, Cout) f32

    def row_body(r):
        parts = []
        for kh in range(3):
            row = x_ref[0, r + kh]                          # (W, Cin), one aligned load
            for kw in range(3):
                parts.append(row[kw:kw + Wo])               # in-register shift, no reload
        slab = jnp.concatenate(parts, axis=-1)              # (Wo, 9*Cin)
        y = jnp.dot(slab, w_ref[...],
                    preferred_element_type=jnp.float32) + bias
        if relu:
            y = jnp.maximum(y, 0.0)
        o_ref[0, r] = y.astype(o_ref.dtype)

    pl.loop(0, Ho)(row_body)


def _conv3x3_im2col_kernel(x_ref, w_ref, b_ref, o_ref, *, relu, w_out, rows_per_tile):
    """Valid 3x3 conv on a fully (kh,kw)-im2col'ed input; one dot per row tile.

    x_ref: (1, Ho*Wo, 9*Cin) bf16 -- channel axis holds all 9 taps side by side
    w_ref: (9*Cin, Cout) bf16     ; b_ref: (1, Cout) f32
    o_ref: (1, Ho*Wo, Cout) bf16
    Each tile is a single MXU matmul with M = rows_per_tile*Wo and K = 9*Cin; the bias
    is folded into the same add (no zero-init + accumulate chain).
    """
    _, HoWo, Cout = o_ref.shape
    M = rows_per_tile * w_out
    n_tiles = HoWo // M
    bias = b_ref[...]                                       # (1, Cout) f32

    def tile_body(t):
        m0 = t * M
        y = jnp.dot(x_ref[0, pl.ds(m0, M), :], w_ref[...],
                    preferred_element_type=jnp.float32) + bias
        if relu:
            y = jnp.maximum(y, 0.0)
        o_ref[0, pl.ds(m0, M), :] = y.astype(o_ref.dtype)

    if n_tiles == 1:
        tile_body(0)
    else:
        pl.loop(0, n_tiles)(tile_body)


def _pointwise_kernel(x_ref, w_ref, b_ref, o_ref, *, activation):
    """(P, Cin) @ (Cin, Cout) + bias, optional relu/sigmoid (1x1 conv core)."""
    y = jnp.dot(x_ref[0], w_ref[...], preferred_element_type=jnp.float32)
    y = y + b_ref[...]
    if activation == "relu":
        y = jnp.maximum(y, 0.0)
    elif activation == "sigmoid":
        y = jax.nn.sigmoid(y)
    o_ref[0] = y.astype(o_ref.dtype)


def _conv_t2x2_kernel(x_ref, w_ref, b_ref, o_ref, *, h, w):
    """ConvTranspose2d(k=2, s=2) with in-kernel row interleave (no XLA 6-D transpose).

    x_ref: (1, H*W, Cin) bf16
    w_ref: (Cin, 4*Cout) bf16, columns ordered (a, b, cout) with output (2i+a, 2j+b, co)
    b_ref: (1, 2*Cout) f32, ordered (b, cout)
    o_ref: (1, 2H, W, 2*Cout) bf16 -- host reshapes to (1, 2H, 2W, Cout) for free.
    """
    C2 = o_ref.shape[-1]                                    # 2*Cout
    bias = b_ref[...]
    y = jnp.dot(x_ref[0], w_ref[...], preferred_element_type=jnp.float32)  # (H*W, 4*Cout)
    y0 = (y[:, :C2] + bias).astype(o_ref.dtype)             # a = 0 rows
    y1 = (y[:, C2:] + bias).astype(o_ref.dtype)             # a = 1 rows
    for i in range(h):                                      # h <= 12, static unroll
        o_ref[0, 2 * i] = y0[i * w:(i + 1) * w, :]
        o_ref[0, 2 * i + 1] = y1[i * w:(i + 1) * w, :]


def _maxpool_kernel(x_ref, o_ref):
    """MaxPool2d(2, 2).  x_ref: (1, H, Wo, 2*C) -- W pairs folded into the channel axis
    by a free host-side reshape; all window gathering happens in VMEM."""
    _, Ho, Wo, C = o_ref.shape

    def row_body(r):
        m = jnp.maximum(x_ref[0, 2 * r], x_ref[0, 2 * r + 1])   # (Wo, 2C) row-pair max
        o_ref[0, r] = jnp.maximum(m[:, :C], m[:, C:])           # column-pair max

    pl.loop(0, Ho)(row_body)


# ----------------------------------------------------------------------------
# Pallas wrappers
# ----------------------------------------------------------------------------
def _pick_rows(Ho, Wo, Cout):
    """Rows per im2col tile: keep the f32 result tile <= ~128 KB (M*Cout*4) while
    batching as many output rows as divide Ho exactly (M = R*Wo per dot)."""
    max_m = max(Wo, min(512, 32768 // max(Cout, 1)))
    best = 1
    for r in range(1, Ho + 1):
        if Ho % r == 0 and r * Wo <= max_m:
            best = r
    return best


def conv3x3(x, w, b, *, relu=True):
    """Valid 3x3 conv. x: (N,H,W,Cin), w: (3,3,Cin,Cout), b: (Cout,)."""
    N, H, W, Cin = x.shape
    Cout = w.shape[-1]
    Ho, Wo = H - 2, W - 2
    if Cin < 8:  # pad tiny contraction dims (the 1-channel input conv); taps still merge
        pad = 8 - Cin
        x = jnp.pad(x, ((0, 0), (0, 0), (0, 0), (0, pad)))
        w = jnp.pad(w, ((0, 0), (0, 0), (0, pad), (0, 0)))
        Cin = 8
    x = x.astype(jnp.bfloat16)
    w9 = w.astype(jnp.bfloat16).reshape(9 * Cin, Cout)      # rows ordered (kh, kw, cin)
    b2 = b.reshape(1, Cout).astype(jnp.float32)

    if Wo >= 64:
        # Wide spatial, light channels: per-row kernel with in-kernel tap gather
        # (a 9x host im2col of these ~5 MB activations would be too much HBM traffic).
        kernel = functools.partial(_conv3x3_row_kernel, relu=relu)
        return pl.pallas_call(
            kernel,
            out_shape=jax.ShapeDtypeStruct((N, Ho, Wo, Cout), jnp.bfloat16),
            grid=(N,),
            in_specs=[
                pl.BlockSpec((1, H, W, Cin), lambda n: (n, 0, 0, 0)),
                _const_spec((9 * Cin, Cout)),
                _const_spec((1, Cout)),
            ],
            out_specs=pl.BlockSpec((1, Ho, Wo, Cout), lambda n: (n, 0, 0, 0)),
            compiler_params=_COMPILER_PARAMS,
        )(x, w9, b2)

    # Small spatial, heavy channels: full (kh,kw) im2col on the host (tensors here are
    # tiny, <= ~5 MB per batch element) so each tile is ONE dot with K = 9*Cin and a
    # contiguous, aligned slab load.
    parts = [x[:, kh:kh + Ho, kw:kw + Wo, :] for kh in range(3) for kw in range(3)]
    xcat = jnp.concatenate(parts, axis=-1).reshape(N, Ho * Wo, 9 * Cin)
    R = _pick_rows(Ho, Wo, Cout)
    kernel = functools.partial(_conv3x3_im2col_kernel, relu=relu,
                               w_out=Wo, rows_per_tile=R)
    y = pl.pallas_call(
        kernel,
        out_shape=jax.ShapeDtypeStruct((N, Ho * Wo, Cout), jnp.bfloat16),
        grid=(N,),
        in_specs=[
            pl.BlockSpec((1, Ho * Wo, 9 * Cin), lambda n: (n, 0, 0)),
            _const_spec((9 * Cin, Cout)),
            _const_spec((1, Cout)),
        ],
        out_specs=pl.BlockSpec((1, Ho * Wo, Cout), lambda n: (n, 0, 0)),
        compiler_params=_COMPILER_PARAMS,
    )(xcat, w9, b2)
    return y.reshape(N, Ho, Wo, Cout)


def pointwise(x2d, w, b, *, activation="none", out_dtype=jnp.bfloat16):
    """x2d: (N, P, Cin), w: (Cin, Cout), b: (Cout,) -> (N, P, Cout)."""
    N, P, Cin = x2d.shape
    Cout = w.shape[-1]
    if Cin < 8:
        pad = 8 - Cin
        x2d = jnp.pad(x2d, ((0, 0), (0, 0), (0, pad)))
        w = jnp.pad(w, ((0, pad), (0, 0)))
        Cin = 8
    x2d = x2d.astype(jnp.bfloat16)
    w = w.astype(jnp.bfloat16)
    b2 = b.reshape(1, Cout).astype(jnp.float32)
    kernel = functools.partial(_pointwise_kernel, activation=activation)
    return pl.pallas_call(
        kernel,
        out_shape=jax.ShapeDtypeStruct((N, P, Cout), out_dtype),
        grid=(N,),
        in_specs=[
            pl.BlockSpec((1, P, Cin), lambda n: (n, 0, 0)),
            _const_spec((Cin, Cout)),
            _const_spec((1, Cout)),
        ],
        out_specs=pl.BlockSpec((1, P, Cout), lambda n: (n, 0, 0)),
        compiler_params=_COMPILER_PARAMS,
    )(x2d, w, b2)


def maxpool2x2(x):
    """MaxPool2d(2, stride=2). x: (N,H,W,C) with H,W even."""
    N, H, W, C = x.shape
    Ho, Wo = H // 2, W // 2
    # Fold W pairs into the channel axis: pure metadata reshape, no HBM copy.
    xr = x.reshape(N, H, Wo, 2 * C)
    return pl.pallas_call(
        _maxpool_kernel,
        out_shape=jax.ShapeDtypeStruct((N, Ho, Wo, C), x.dtype),
        grid=(N,),
        in_specs=[pl.BlockSpec((1, H, Wo, 2 * C), lambda n: (n, 0, 0, 0))],
        out_specs=pl.BlockSpec((1, Ho, Wo, C), lambda n: (n, 0, 0, 0)),
        compiler_params=_COMPILER_PARAMS,
    )(xr)


def conv_transpose2x2(x, w, b):
    """ConvTranspose2d(k=2, s=2). x: (N,H,W,Cin); w torch-layout (Cin,Cout,2,2); b: (Cout,).
    Even/odd output rows are interleaved inside the kernel; both reshapes below are free
    row-major views (no XLA transpose)."""
    N, H, W, Cin = x.shape
    Cout = w.shape[1]
    w_all = jnp.transpose(w, (0, 2, 3, 1)).reshape(Cin, 4 * Cout).astype(jnp.bfloat16)
    b2 = jnp.tile(b.astype(jnp.float32), 2).reshape(1, 2 * Cout)     # (b, cout) order
    x2 = x.reshape(N, H * W, Cin).astype(jnp.bfloat16)
    kernel = functools.partial(_conv_t2x2_kernel, h=H, w=W)
    y = pl.pallas_call(
        kernel,
        out_shape=jax.ShapeDtypeStruct((N, 2 * H, W, 2 * Cout), jnp.bfloat16),
        grid=(N,),
        in_specs=[
            pl.BlockSpec((1, H * W, Cin), lambda n: (n, 0, 0)),
            _const_spec((Cin, 4 * Cout)),
            _const_spec((1, 2 * Cout)),
        ],
        out_specs=pl.BlockSpec((1, 2 * H, W, 2 * Cout), lambda n: (n, 0, 0, 0)),
        compiler_params=_COMPILER_PARAMS,
    )(x2, w_all, b2)
    return y.reshape(N, 2 * H, 2 * W, Cout)


def conv1x1(x, w, b, *, activation="none", out_dtype=jnp.bfloat16):
    """1x1 conv. x: (N,H,W,Cin), w: (Cin,Cout), b: (Cout,)."""
    N, H, W, Cin = x.shape
    Cout = w.shape[-1]
    y = pointwise(x.reshape(N, H * W, Cin), w, b,
                  activation=activation, out_dtype=out_dtype)
    return y.reshape(N, H, W, Cout)


def cropping(image, image2):
    """Exact NHWC port of the reference `cropping` (center crop via two slices)."""
    H, W = image.shape[1], image.shape[2]
    th, tw = image2.shape[1], image2.shape[2]
    image = image[:, : th + (H - th) // 2, : tw + (W - tw) // 2, :]
    image = image[:, (H - th) // 2:, (W - tw) // 2:, :]
    return image


# ----------------------------------------------------------------------------
# Deterministic parameter construction (shapes from UNet.__init__)
# ----------------------------------------------------------------------------
def _init_conv(key, kh, kw, cin, cout):
    wkey, bkey = jax.random.split(key)
    std = float(np.sqrt(2.0 / (cin * kh * kw)))
    w = (std * jax.random.normal(wkey, (kh, kw, cin, cout), jnp.float32)).astype(jnp.bfloat16)
    b = 0.01 * jax.random.normal(bkey, (cout,), jnp.float32)
    return {"w": w, "b": b}


def _init_convT(key, cin, cout):
    wkey, bkey = jax.random.split(key)
    std = float(np.sqrt(2.0 / (cin * 4)))
    w = (std * jax.random.normal(wkey, (cin, cout, 2, 2), jnp.float32)).astype(jnp.bfloat16)
    b = 0.01 * jax.random.normal(bkey, (cout,), jnp.float32)
    return {"w": w, "b": b}


def init_unet_params(key):
    ks = iter(jax.random.split(key, 32))
    p = {}
    p["in1_c1"] = _init_conv(next(ks), 3, 3, 1, 64)
    p["in1_c2"] = _init_conv(next(ks), 3, 3, 64, 64)
    p["in2_c1"] = _init_conv(next(ks), 3, 3, 64, 128)
    p["in2_c2"] = _init_conv(next(ks), 3, 3, 128, 128)
    p["in3_c1"] = _init_conv(next(ks), 3, 3, 128, 256)
    p["in3_c2"] = _init_conv(next(ks), 3, 3, 256, 256)
    p["in4_c1"] = _init_conv(next(ks), 3, 3, 256, 512)
    p["in4_c2"] = _init_conv(next(ks), 3, 3, 512, 512)
    p["in5_c1"] = _init_conv(next(ks), 3, 3, 512, 1024)
    p["in5_c2"] = _init_conv(next(ks), 3, 3, 1024, 1024)
    p["in5_up"] = _init_convT(next(ks), 1024, 512)
    p["out1_c1"] = _init_conv(next(ks), 3, 3, 1024, 512)
    p["out1_c2"] = _init_conv(next(ks), 3, 3, 512, 512)
    p["out1_up"] = _init_convT(next(ks), 512, 256)
    p["out2_c1"] = _init_conv(next(ks), 3, 3, 512, 256)
    p["out2_c2"] = _init_conv(next(ks), 3, 3, 256, 256)
    p["out2_up"] = _init_convT(next(ks), 256, 128)
    p["out3_c1"] = _init_conv(next(ks), 3, 3, 256, 128)
    p["out3_c2"] = _init_conv(next(ks), 3, 3, 128, 128)
    p["out3_up"] = _init_convT(next(ks), 128, 64)
    p["out4_c1"] = _init_conv(next(ks), 3, 3, 128, 64)
    p["out4_c2"] = _init_conv(next(ks), 3, 3, 64, 64)
    p["out4_p1"] = _init_conv(next(ks), 1, 1, 64, 2)
    p["out4_p2"] = _init_conv(next(ks), 1, 1, 2, 1)
    return p


# ----------------------------------------------------------------------------
# UNet forward (matches UNet.forward)
# ----------------------------------------------------------------------------
def unet_forward(params, image_nchw):
    x = jnp.transpose(image_nchw, (0, 2, 3, 1)).astype(jnp.float32)  # NCHW -> NHWC

    # in1: Conv2d(1, 64, 3, padding=(94,94)) + ReLU + Conv2d(64,64,3) + ReLU
    x1 = jnp.pad(x, ((0, 0), (94, 94), (94, 94), (0, 0)))
    o1 = conv3x3(x1, params["in1_c1"]["w"], params["in1_c1"]["b"], relu=True)
    o1 = conv3x3(o1, params["in1_c2"]["w"], params["in1_c2"]["b"], relu=True)

    o2 = maxpool2x2(o1)
    o2 = conv3x3(o2, params["in2_c1"]["w"], params["in2_c1"]["b"], relu=True)
    o2 = conv3x3(o2, params["in2_c2"]["w"], params["in2_c2"]["b"], relu=True)

    o3 = maxpool2x2(o2)
    o3 = conv3x3(o3, params["in3_c1"]["w"], params["in3_c1"]["b"], relu=True)
    o3 = conv3x3(o3, params["in3_c2"]["w"], params["in3_c2"]["b"], relu=True)

    o4 = maxpool2x2(o3)
    o4 = conv3x3(o4, params["in4_c1"]["w"], params["in4_c1"]["b"], relu=True)
    o4 = conv3x3(o4, params["in4_c2"]["w"], params["in4_c2"]["b"], relu=True)

    o5 = maxpool2x2(o4)
    o5 = conv3x3(o5, params["in5_c1"]["w"], params["in5_c1"]["b"], relu=True)
    o5 = conv3x3(o5, params["in5_c2"]["w"], params["in5_c2"]["b"], relu=True)
    o5 = conv_transpose2x2(o5, params["in5_up"]["w"], params["in5_up"]["b"])

    u = jnp.concatenate([o5, cropping(o4, o5)], axis=-1)
    o6 = conv3x3(u, params["out1_c1"]["w"], params["out1_c1"]["b"], relu=True)
    o6 = conv3x3(o6, params["out1_c2"]["w"], params["out1_c2"]["b"], relu=True)
    o6 = conv_transpose2x2(o6, params["out1_up"]["w"], params["out1_up"]["b"])

    u = jnp.concatenate([o6, cropping(o3, o6)], axis=-1)
    o7 = conv3x3(u, params["out2_c1"]["w"], params["out2_c1"]["b"], relu=True)
    o7 = conv3x3(o7, params["out2_c2"]["w"], params["out2_c2"]["b"], relu=True)
    o7 = conv_transpose2x2(o7, params["out2_up"]["w"], params["out2_up"]["b"])

    u = jnp.concatenate([o7, cropping(o2, o7)], axis=-1)
    o8 = conv3x3(u, params["out3_c1"]["w"], params["out3_c1"]["b"], relu=True)
    o8 = conv3x3(o8, params["out3_c2"]["w"], params["out3_c2"]["b"], relu=True)
    o8 = conv_transpose2x2(o8, params["out3_up"]["w"], params["out3_up"]["b"])

    u = jnp.concatenate([o8, cropping(o1, o8)], axis=-1)
    o9 = conv3x3(u, params["out4_c1"]["w"], params["out4_c1"]["b"], relu=True)
    o9 = conv3x3(o9, params["out4_c2"]["w"], params["out4_c2"]["b"], relu=True)

    # Fuse Conv2d(64,2,1) -> Conv2d(2,1,1) -> Sigmoid (the reference has NO nonlinearity
    # between the two 1x1 convs) into a single 64->1 pointwise + sigmoid:
    # w_eff = w1 @ w2, b_eff = b1 @ w2 + b2.
    w1 = params["out4_p1"]["w"].reshape(64, 2).astype(jnp.float32)
    b1 = params["out4_p1"]["b"].astype(jnp.float32)
    w2 = params["out4_p2"]["w"].reshape(2, 1).astype(jnp.float32)
    b2 = params["out4_p2"]["b"].astype(jnp.float32)
    w_eff = w1 @ w2
    b_eff = b1 @ w2 + b2
    o9 = conv1x1(o9, w_eff, b_eff, activation="sigmoid", out_dtype=jnp.float32)

    return jnp.transpose(o9, (0, 3, 1, 2))  # NHWC -> NCHW


def model_checkpoint_forward(params, model_fn, image, epoch):
    """ModelCheckpoint.forward(model, epoch) analogue."""
    # TODO(synk): torch.save(model.state_dict()) / os.makedirs is host-side file I/O with
    # no Pallas equivalent; instead we exercise the checkpointed model's forward pass.
    del epoch
    return model_fn(params, image)


if __name__ == "__main__":
    key = jax.random.PRNGKey(0)
    pkey, xkey = jax.random.split(key)
    params = init_unet_params(pkey)
    # PyTorch-style NCHW input: batch=2, 1 channel, 16x16 (UNet pad 94 makes this valid).
    x = jax.random.normal(xkey, (2, 1, 16, 16), jnp.float32)

    out = model_checkpoint_forward(params, unet_forward, x, epoch=0)
    out = jax.block_until_ready(out)

    assert out.shape == (2, 1, 20, 20), out.shape
    assert bool(jnp.all(jnp.isfinite(out)))
    assert bool(jnp.all((out >= 0.0) & (out <= 1.0)))  # sigmoid output
    print("KERNEL_OK")
</pallas_src>

<mosaic_0001>
module attributes {stable_mosaic.version = 11 : i64} {
  func.func @_k(%arg0: i32, %arg1: memref<8x128xf32, #tpu.memory_space<vmem>>, %arg2: memref<8x128xf32, #tpu.memory_space<vmem>>, %arg3: memref<8x128xf32, #tpu.memory_space<vmem>>) attributes {dimension_semantics = [#tpu.dimension_semantics<arbitrary>], iteration_bounds = array<i64: 2>, scalar_prefetch = 0 : i64, scratch_operands = 0 : i64, tpu.core_type = #tpu.core_type<tc>, window_params = [{transform_indices = @transform_0, window_bounds = array<i64: 8, 128>}, {pipeline_mode = #tpu.pipeline_mode<synchronous>, transform_indices = @transform_1, window_bounds = array<i64: 8, 128>}, {transform_indices = @transform_2, window_bounds = array<i64: 8, 128>}]} {
    %c0 = arith.constant 0 : index
    %c0_0 = arith.constant 0 : index
    %0 = vector.load %arg1[%c0, %c0_0] : memref<8x128xf32, #tpu.memory_space<vmem>>, vector<8x128xf32>
    %c0_1 = arith.constant 0 : index
    %c0_2 = arith.constant 0 : index
    %1 = vector.load %arg2[%c0_1, %c0_2] : memref<8x128xf32, #tpu.memory_space<vmem>>, vector<8x128xf32>
    %2 = arith.addf %0, %1 : vector<8x128xf32>
    %c0_3 = arith.constant 0 : index
    %c0_4 = arith.constant 0 : index
    %3 = vector.load %arg3[%c0_3, %c0_4] : memref<8x128xf32, #tpu.memory_space<vmem>>, vector<8x128xf32>
    tpu.vector_store %arg3[%c0_3, %c0_4], %2 {strides = array<i32>} : memref<8x128xf32, #tpu.memory_space<vmem>>, vector<8x128xf32>,
    return
  }
  func.func @transform_0(%arg0: i32) -> (i32, i32) {
    %c0_i32 = arith.constant 0 : i32
    %c0_i32_0 = arith.constant 0 : i32
    return %arg0, %c0_i32 : i32, i32
  }
  func.func @transform_1(%arg0: i32) -> (i32, i32) {
    %c0_i32 = arith.constant 0 : i32
    %c0_i32_0 = arith.constant 0 : i32
    %c0_i32_1 = arith.constant 0 : i32
    return %c0_i32, %c0_i32_0 : i32, i32
  }
  func.func @transform_2(%arg0: i32) -> (i32, i32) {
    %c0_i32 = arith.constant 0 : i32
    %c0_i32_0 = arith.constant 0 : i32
    return %arg0, %c0_i32 : i32, i32
  }
}

module attributes {stable_mosaic.version = 11 : i64} {
  func.func @_conv3x3_row_kernel(%arg0: i32, %arg1: memref<1x204x204x8xbf16, #tpu.memory_space<vmem>>, %arg2: memref<72x64xbf16, #tpu.memory_space<vmem>>, %arg3: memref<1x64xf32, #tpu.memory_space<vmem>>, %arg4: memref<1x202x202x64xbf16, #tpu.memory_space<vmem>>) attributes {dimension_semantics = [#tpu.dimension_semantics<parallel>], iteration_bounds = array<i64: 2>, scalar_prefetch = 0 : i64, scratch_operands = 0 : i64, tpu.core_type = #tpu.core_type<tc>, window_params = [{transform_indices = @transform_0, window_bounds = array<i64: 1, 204, 204, 8>}, {pipeline_mode = #tpu.pipeline_mode<synchronous>, transform_indices = @transform_1, window_bounds = array<i64: 72, 64>}, {pipeline_mode = #tpu.pipeline_mode<synchronous>, transform_indices = @transform_2, window_bounds = array<i64: 1, 64>}, {transform_indices = @transform_3, window_bounds = array<i64: 1, 202, 202, 64>}]} {
    %c0 = arith.constant 0 : index
    %c0_0 = arith.constant 0 : index
    %0 = vector.load %arg3[%c0, %c0_0] : memref<1x64xf32, #tpu.memory_space<vmem>>, vector<1x64xf32>
    %c0_i32 = arith.constant 0 : i32
    %c202_i32 = arith.constant 202 : i32
    %1 = arith.addi %c0_i32, %c202_i32 : i32
    %c1_i32 = arith.constant 1 : i32
    scf.for %arg5 = %c0_i32 to %1 step %c1_i32  : i32 {
      %c1_i32_2 = arith.constant 1 : i32
      %2 = arith.muli %arg5, %c1_i32_2 : i32
      %c0_i32_3 = arith.constant 0 : i32
      %3 = arith.addi %c0_i32_3, %2 : i32
      %c0_i32_4 = arith.constant 0 : i32
      %4 = arith.addi %3, %c0_i32_4 : i32
      %c0_5 = arith.constant 0 : index
      %5 = arith.index_cast %4 : i32 to index
      %c0_6 = arith.constant 0 : index
      %c0_7 = arith.constant 0 : index
      %6 = vector.load %arg1[%c0_5, %5, %c0_6, %c0_7] : memref<1x204x204x8xbf16, #tpu.memory_space<vmem>>, vector<1x1x204x8xbf16>
      %7 = vector.shape_cast %6 : vector<1x1x204x8xbf16> to vector<204x8xbf16>
      %8 = vector.extract_strided_slice %7 {offsets = [0, 0], sizes = [202, 8], strides = [1, 1]} : vector<204x8xbf16> to vector<202x8xbf16>
      %9 = vector.extract_strided_slice %7 {offsets = [1, 0], sizes = [202, 8], strides = [1, 1]} : vector<204x8xbf16> to vector<202x8xbf16>
      %10 = vector.extract_strided_slice %7 {offsets = [2, 0], sizes = [202, 8], strides = [1, 1]} : vector<204x8xbf16> to vector<202x8xbf16>
      %c1_i32_8 = arith.constant 1 : i32
      %11 = arith.addi %3, %c1_i32_8 : i32
      %c0_9 = arith.constant 0 : index
      %12 = arith.index_cast %11 : i32 to index
      %c0_10 = arith.constant 0 : index
      %c0_11 = arith.constant 0 : index
      %13 = vector.load %arg1[%c0_9, %12, %c0_10, %c0_11] : memref<1x204x204x8xbf16, #tpu.memory_space<vmem>>, vector<1x1x204x8xbf16>
      %14 = vector.shape_cast %13 : vector<1x1x204x8xbf16> to vector<204x8xbf16>
      %15 = vector.extract_strided_slice %14 {offsets = [0, 0], sizes = [202, 8], strides = [1, 1]} : vector<204x8xbf16> to vector<202x8xbf16>
      %16 = vector.extract_strided_slice %14 {offsets = [1, 0], sizes = [202, 8], strides = [1, 1]} : vector<204x8xbf16> to vector<202x8xbf16>
      %17 = vector.extract_strided_slice %14 {offsets = [2, 0], sizes = [202, 8], strides = [1, 1]} : vector<204x8xbf16> to vector<202x8xbf16>
      %c2_i32 = arith.constant 2 : i32
      %18 = arith.addi %3, %c2_i32 : i32
      %c0_12 = arith.constant 0 : index
      %19 = arith.index_cast %18 : i32 to index
      %c0_13 = arith.constant 0 : index
      %c0_14 = arith.constant 0 : index
      %20 = vector.load %arg1[%c0_12, %19, %c0_13, %c0_14] : memref<1x204x204x8xbf16, #tpu.memory_space<vmem>>, vector<1x1x204x8xbf16>
      %21 = vector.shape_cast %20 : vector<1x1x204x8xbf16> to vector<204x8xbf16>
      %22 = vector.extract_strided_slice %21 {offsets = [0, 0], sizes = [202, 8], strides = [1, 1]} : vector<204x8xbf16> to vector<202x8xbf16>
      %23 = vector.extract_strided_slice %21 {offsets = [1, 0], sizes = [202, 8], strides = [1, 1]} : vector<204x8xbf16> to vector<202x8xbf16>
      %24 = vector.extract_strided_slice %21 {offsets = [2, 0], sizes = [202, 8], strides = [1, 1]} : vector<204x8xbf16> to vector<202x8xbf16>
      %25 = tpu.concatenate %8, %9, %10, %15, %16, %17, %22, %23, %24 in 1 : vector<202x8xbf16>, vector<202x8xbf16>, vector<202x8xbf16>, vector<202x8xbf16>, vector<202x8xbf16>, vector<202x8xbf16>, vector<202x8xbf16>, vector<202x8xbf16>, vector<202x8xbf16> -> vector<202x72xbf16>
      %c0_15 = arith.constant 0 : index
      %c0_16 = arith.constant 0 : index
      %26 = vector.load %arg2[%c0_15, %c0_16] : memref<72x64xbf16, #tpu.memory_space<vmem>>, vector<72x64xbf16>
      %cst = arith.constant dense<0.000000e+00> : vector<202x64xf32>
      %27 = tpu.matmul %25, %26, %cst {dimension_numbers = #tpu.dot_dimension_numbers<[1], [0], [0], [1], [0, 0, 1, 1], [], []>} : vector<202x72xbf16>, vector<72x64xbf16>, vector<202x64xf32> -> vector<202x64xf32>
      %28 = vector.broadcast %0 : vector<1x64xf32> to vector<202x64xf32>
      %29 = arith.addf %27, %28 : vector<202x64xf32>
      %cst_17 = arith.constant 0.000000e+00 : f32
      %30 = vector.broadcast %cst_17 : f32 to vector<202x64xf32>
      %31 = arith.maximumf %29, %30 : vector<202x64xf32>
      %32 = arith.truncf %31 : vector<202x64xf32> to vector<202x64xbf16>
      %c0_18 = arith.constant 0 : index
      %33 = arith.index_cast %3 : i32 to index
      %c0_19 = arith.constant 0 : index
      %c0_20 = arith.constant 0 : index
      %34 = vector.load %arg4[%c0_18, %33, %c0_19, %c0_20] : memref<1x202x202x64xbf16, #tpu.memory_space<vmem>>, vector<1x1x202x64xbf16>
      %35 = vector.shape_cast %34 : vector<1x1x202x64xbf16> to vector<202x64xbf16>
      %36 = vector.shape_cast %32 : vector<202x64xbf16> to vector<1x1x202x64xbf16>
      tpu.vector_store %arg4[%c0_18, %33, %c0_19, %c0_20], %36 {strides = array<i32>} : memref<1x202x202x64xbf16, #tpu.memory_space<vmem>>, vector<1x1x202x64xbf16>,
    }
    %c202_i32_1 = arith.constant 202 : i32
    return
  }
  func.func @transform_0(%arg0: i32) -> (i32, i32, i32, i32) {
    %c0_i32 = arith.constant 0 : i32
    %c0_i32_0 = arith.constant 0 : i32
    %c0_i32_1 = arith.constant 0 : i32
    %c0_i32_2 = arith.constant 0 : i32
    return %arg0, %c0_i32, %c0_i32_0, %c0_i32_1 : i32, i32, i32, i32
  }
  func.func @transform_1(%arg0: i32) -> (i32, i32) {
    %c0_i32 = arith.constant 0 : i32
    %c0_i32_0 = arith.constant 0 : i32
    %c0_i32_1 = arith.constant 0 : i32
    return %c0_i32, %c0_i32_0 : i32, i32
  }
  func.func @transform_2(%arg0: i32) -> (i32, i32) {
    %c0_i32 = arith.constant 0 : i32
    %c0_i32_0 = arith.constant 0 : i32
    %c0_i32_1 = arith.constant 0 : i32
    return %c0_i32, %c0_i32_0 : i32, i32
  }
  func.func @transform_3(%arg0: i32) -> (i32, i32, i32, i32) {
    %c0_i32 = arith.constant 0 : i32
    %c0_i32_0 = arith.constant 0 : i32
    %c0_i32_1 = arith.constant 0 : i32
    %c0_i32_2 = arith.constant 0 : i32
    return %arg0, %c0_i32, %c0_i32_0, %c0_i32_1 : i32, i32, i32, i32
  }
}

</mosaic_0001>

<llo_original>
// kernel: tpu_custom_call.1
$region0: #{tpu_custom_call.1}
  #allocation0 [shape = 'u32[]', space=smem, size = 0x4, offset = 0x4, fixed_abs, tag = 'smem constant byte address 0x4 - core index']
  #allocation1 [shape = 'u32[144,128]{1,0:T(1,128)}', space=vmem, size = 0x12000, scoped, tag = 'internal scratch']
  %s0 = inlined_call_operand.hbm [shape: f32[16,128], index: 0, kind: input, shape index: {}]
  %s1 = inlined_call_operand.hbm [shape: f32[8,128], index: 1, kind: input, shape index: {}]
  %s2 = inlined_call_operand.hbm [shape: f32[16,128], index: 2, kind: output, shape index: {}]
  %s3 = sld [smem:[#allocation0]]
  $region49: #{tpu_custom_call.1} parent=0
    _
  %s5 = ssub.s32 1, %s3
  %s6 = scalar_select 0, %s5, %s3
  $region1: #{tpu_custom_call.1} parent=0
    #allocation2 [shape = 'u8[8192]{0}', space=vmem, size = 0x2000, scoped, tag = 'input window, operand 0']
    #allocation3 [shape = 's32[2]{0}', space=sflag, size = 0x8, scoped, tag = 'scoped memory for tpu_custom_call.1']
    #allocation4 [shape = 's32[2]{0}', space=sflag, size = 0x8, scoped, tag = 'scoped memory for tpu_custom_call.1']
    #allocation5 [shape = 'u8[4096]{0}', space=vmem, size = 0x1000, scoped, tag = 'input window, operand 1, single buffered']
    #allocation6 [shape = 's32[1]{0}', space=sflag, size = 0x4, scoped, tag = 'scoped memory for tpu_custom_call.1']
    #allocation7 [shape = 'u8[8192]{0}', space=vmem, size = 0x2000, scoped, tag = 'output window, operand 0']
    %7 = vsyncpa [#allocation3], 0
    %s8 = scalar_lea.sflag [#allocation3], 1
    %9 = vsyncpa %s8, 0
    %10 = vsyncpa [#allocation6], 0
    %11 = vsyncpa [#allocation4], 0
    %s12 = scalar_lea.sflag [#allocation4], 1
    %13 = vsyncpa %s12, 0
    loop: start=0, step=1, limit=4
    $region2: #{tpu_custom_call.1} parent=1 // loop_pre_header
      _
    $region3: #{tpu_custom_call.1} parent=1 // loop_header
      %s15 = sphi 0, %s19
      %p16 = scmp.ge.s32.totalorder %s15, 4
      %s25 = sphi 0, %s27
      %s28 = sphi 0, %s25
      %s29 = sphi 0, %s28
      %s45 = sphi 0, %s29
      %s49 = sphi 0, %s49
      %s51 = sphi 0, %s49
      %s52 = sphi 0, %s51
      %s66 = sphi 0, %s52
      %s72 = sphi 0, %s74
      %s75 = sphi 0, %s72
      %s76 = sphi 0, %s75
      %s92 = sphi 0, %s76
    $region4: #{tpu_custom_call.1} parent=1 // loop_header_branch
      %18 = sbr.rel (%p16) target = $region8
    $region5: #{tpu_custom_call.1} parent=1 // loop_body
      %s20 = ssub.s32 %s15, 1
      %s21 = ssub.s32 %s15, 2
      %s22 = sadd.s32 %s15, 1
      %s23 = ssub.s32 %s15, %s22
      %p24 = scmp.eq.s32.totalorder %s23, 0
      %s26 = sadd.s32 %s25, 1
      %s27 = scalar_select %p24, %s25, %s26
      %p30 = pneg %p24
      %p31 = scmp.eq.s32.totalorder %s15, 1
      %p32 = por %p30, %p31
      %p33 = scmp.ne.s32.totalorder %s25, %s28
      %p34 = scmp.eq.s32.totalorder %s15, 0
      %p35 = por %p33, %p34
      %p36 = scmp.ne.s32.totalorder %s25, %s28
      %p37 = scmp.eq.s32.totalorder %s20, 1
      %p38 = por %p36, %p37
      %p39 = scmp.ne.s32.totalorder %s28, %s29
      %p40 = scmp.eq.s32.totalorder %s20, 0
      %p41 = por %p39, %p40
      %p42 = scmp.ne.s32.totalorder %s28, %s29
      %p43 = scmp.eq.s32.totalorder %s21, 1
      %p44 = por %p42, %p43
      %p46 = scmp.ne.s32.totalorder %s29, %s45
      %p47 = scmp.eq.s32.totalorder %s21, 0
      %p48 = por %p46, %p47
      %s50 = sadd.s32 %s49, 1
      %p53 = scmp.eq.s32.totalorder %s15, 1
      %p54 = scmp.ne.s32.totalorder %s49, %s51
      %p55 = scmp.eq.s32.totalorder %s15, 0
      %p56 = por %p54, %p55
      %p57 = scmp.ne.s32.totalorder %s49, %s51
      %p58 = scmp.eq.s32.totalorder %s20, 1
      %p59 = por %p57, %p58
      %p60 = scmp.ne.s32.totalorder %s51, %s52
      %p61 = scmp.eq.s32.totalorder %s20, 0
      %p62 = por %p60, %p61
      %p63 = scmp.ne.s32.totalorder %s51, %s52
      %p64 = scmp.eq.s32.totalorder %s21, 1
      %p65 = por %p63, %p64
      %p67 = scmp.ne.s32.totalorder %s52, %s66
      %p68 = scmp.eq.s32.totalorder %s21, 0
      %p69 = por %p67, %p68
      %s70 = ssub.s32 %s15, %s22
      %p71 = scmp.eq.s32.totalorder %s70, 0
      %s73 = sadd.s32 %s72, 1
      %s74 = scalar_select %p71, %s72, %s73
      %p77 = pneg %p71
      %p78 = scmp.eq.s32.totalorder %s15, 1
      %p79 = por %p77, %p78
      %p80 = scmp.ne.s32.totalorder %s72, %s75
      %p81 = scmp.eq.s32.totalorder %s15, 0
      %p82 = por %p80, %p81
      %p83 = scmp.ne.s32.totalorder %s72, %s75
      %p84 = scmp.eq.s32.totalorder %s20, 1
      %p85 = por %p83, %p84
      %p86 = scmp.ne.s32.totalorder %s75, %s76
      %p87 = scmp.eq.s32.totalorder %s20, 0
      %p88 = por %p86, %p87
      %p89 = scmp.ne.s32.totalorder %s75, %s76
      %p90 = scmp.eq.s32.totalorder %s21, 1
      %p91 = por %p89, %p90
      %p93 = scmp.ne.s32.totalorder %s76, %s92
      %p94 = scmp.eq.s32.totalorder %s21, 0
      %p95 = por %p93, %p94
      %p96 = scmp.le.s32.totalorder 1, %s15
      %p97 = scmp.lt.s32.totalorder %s15, 3
      %p98 = pnand %p96, %p97
      %p99 = pneg %p98
      // Predicated region
      $region9: #{tpu_custom_call.1} parent=5 // pred_check
        _
      $region10: #{tpu_custom_call.1} parent=5 // pred_check_branch
        %101 = sbr.rel (%p98) target = $region12
      $region11: #{tpu_custom_call.1} parent=5 // pred_region
        %s102 = ssub.s32 %s15, 1
        // Predicated region
        $region13: #{tpu_custom_call.1} parent=11 // pred_check
          %p103 = pneg %p62
        $region14: #{tpu_custom_call.1} parent=11 // pred_check_branch
          %105 = sbr.rel (%p103) target = $region16
        $region15: #{tpu_custom_call.1} parent=11 // pred_region
          %s107 = ssub.s32 128, 128
          %108 = vsyncadd [#allocation6], %s107
          %s110 = sshll.u32 [#allocation5], 4
          %s111 = int_to_ptr.vmem [resolvable:$true] %s110
          %113 = dma.hbm_to_vmem [thread:$0]  %s1, 128, %s111, [#allocation6]
        $region16: #{tpu_custom_call.1} parent=11 // pred_fallthru
          _
      $region12: #{tpu_custom_call.1} parent=5 // pred_fallthru
        _
      %p114 = scmp.lt.s32.totalorder %s15, 2
      // Predicated region
      $region17: #{tpu_custom_call.1} parent=5 // pred_check
        %p115 = pneg %p114
      $region18: #{tpu_custom_call.1} parent=5 // pred_check_branch
        %117 = sbr.rel (%p115) target = $region20
      $region19: #{tpu_custom_call.1} parent=5 // pred_region
        // Predicated region
        $region21: #{tpu_custom_call.1} parent=19 // pred_check
          %p118 = pneg %p35
        $region22: #{tpu_custom_call.1} parent=19 // pred_check_branch
          %120 = sbr.rel (%p118) target = $region24
        $region23: #{tpu_custom_call.1} parent=19 // pred_region
          %s121 = sand.u32 %s25, 1
          %s122 = scalar_lea.sflag [#allocation3], %s121
          %s123 = sand.u32 %s25, 1
          %s124 = smul.addr %s123, 8
          %s125 = scalar_lea.vmem [#allocation2], %s124
          %s127 = ssub.s32 128, 128
          %128 = vsyncadd %s122, %s127
          %s129 = smul.addr %s15, 128
          %s130 = scalar_lea.hbm %s0, %s129
          %s132 = sshll.u32 %s125, 4
          %s133 = int_to_ptr.vmem [resolvable:$true] %s132
          %135 = dma.hbm_to_vmem [thread:$0]  %s130, 128, %s133, %s122
        $region24: #{tpu_custom_call.1} parent=19 // pred_fallthru
          _
      $region20: #{tpu_custom_call.1} parent=5 // pred_fallthru
        _
      %p136 = scmp.le.s32.totalorder 1, %s15
      %p137 = scmp.lt.s32.totalorder %s15, 3
      %p138 = pnand %p136, %p137
      %p139 = pneg %p138
      // Predicated region
      $region25: #{tpu_custom_call.1} parent=5 // pred_check
        _
      $region26: #{tpu_custom_call.1} parent=5 // pred_check_branch
        %141 = sbr.rel (%p138) target = $region28
      $region27: #{tpu_custom_call.1} parent=5 // pred_region
        %s142 = ssub.s32 %s15, 1
        %s143 = sand.u32 %s28, 1
        %s144 = scalar_lea.sflag [#allocation3], %s143
        %s145 = sand.u32 %s28, 1
        %s146 = smul.addr %s145, 8
        %s147 = scalar_lea.vmem [#allocation2], %s146
        // Predicated region
        $region29: #{tpu_custom_call.1} parent=27 // pred_check
          %p148 = pneg %p41
        $region30: #{tpu_custom_call.1} parent=27 // pred_check_branch
          %150 = sbr.rel (%p148) target = $region32
        $region31: #{tpu_custom_call.1} parent=27 // pred_region
          %151 = dma.done %s144, 128
        $region32: #{tpu_custom_call.1} parent=27 // pred_fallthru
          _
        // Predicated region
        $region33: #{tpu_custom_call.1} parent=27 // pred_check
          %p152 = pneg %p62
        $region34: #{tpu_custom_call.1} parent=27 // pred_check_branch
          %154 = sbr.rel (%p152) target = $region36
        $region35: #{tpu_custom_call.1} parent=27 // pred_region
          %155 = dma.done [#allocation6], 128
        $region36: #{tpu_custom_call.1} parent=27 // pred_fallthru
          _
        %s156 = sand.u32 %s28, 1
        %s157 = scalar_lea.sflag [#allocation3], %s156
        %s158 = sand.u32 %s28, 1
        %s159 = smul.addr %s158, 8
        %s160 = scalar_lea.vmem [#allocation2], %s159
        %p161 = pneg %p41
        %p162 = pneg %p38
        %p163 = pneg %p62
        %p164 = pneg %p59
        %p165 = pneg %p88
        %p166 = pneg %p85
        %s167 = sand.u32 %s75, 1
        %s168 = scalar_lea.sflag [#allocation4], %s167
        %s169 = sand.u32 %s75, 1
        %s170 = smul.addr %s169, 8
        %s171 = scalar_lea.vmem [#allocation7], %s170
        %v172 = vld [vmem:[%s147] sm:$0xff]
        %v173 = vld [vmem:[#allocation5] sm:$0xff]
        %v174 = vadd.f32 %v172, %v173
        %175 = vst [vmem:[%s171] sm:$0xff] %v174
        %s176 = sand.u32 %s75, 1
        %s177 = scalar_lea.sflag [#allocation4], %s176
        %s178 = sand.u32 %s75, 1
        %s179 = smul.addr %s178, 8
        %s180 = scalar_lea.vmem [#allocation7], %s179
        // Predicated region
        $region37: #{tpu_custom_call.1} parent=27 // pred_check
          %p181 = pneg %p85
        $region38: #{tpu_custom_call.1} parent=27 // pred_check_branch
          %183 = sbr.rel (%p181) target = $region40
        $region39: #{tpu_custom_call.1} parent=27 // pred_region
          %s185 = ssub.s32 128, 128
          %186 = vsyncadd %s177, %s185
          %s187 = smul.addr %s20, 128
          %s188 = scalar_lea.hbm %s2, %s187
          %s190 = sshll.u32 %s180, 4
          %s191 = int_to_ptr.vmem [resolvable:$true] %s190
          %193 = dma.vmem_to_hbm [thread:$0]  %s191, 128, %s188, %s177
        $region40: #{tpu_custom_call.1} parent=27 // pred_fallthru
          _
      $region28: #{tpu_custom_call.1} parent=5 // pred_fallthru
        _
      %p194 = scmp.le.s32.totalorder 2, %s15
      // Predicated region
      $region41: #{tpu_custom_call.1} parent=5 // pred_check
        %p195 = pneg %p194
      $region42: #{tpu_custom_call.1} parent=5 // pred_check_branch
        %197 = sbr.rel (%p195) target = $region44
      $region43: #{tpu_custom_call.1} parent=5 // pred_region
        %s198 = ssub.s32 %s15, 2
        // Predicated region
        $region45: #{tpu_custom_call.1} parent=43 // pred_check
          %p199 = pneg %p91
        $region46: #{tpu_custom_call.1} parent=43 // pred_check_branch
          %201 = sbr.rel (%p199) target = $region48
        $region47: #{tpu_custom_call.1} parent=43 // pred_region
          %s202 = sand.u32 %s76, 1
          %s203 = scalar_lea.sflag [#allocation4], %s202
          %s204 = sand.u32 %s76, 1
          %s205 = smul.addr %s204, 8
          %s206 = scalar_lea.vmem [#allocation7], %s205
          %207 = dma.done %s203, 128
        $region48: #{tpu_custom_call.1} parent=43 // pred_fallthru
          _
      $region44: #{tpu_custom_call.1} parent=5 // pred_fallthru
        _
    $region6: #{tpu_custom_call.1} parent=1 // loop_footer
      %s19 = sadd.s32 1, %s15
    $region7: #{tpu_custom_call.1} parent=1 // loop_footer_branch
      %14 = sbr.rel target = $region3
    $region8: #{tpu_custom_call.1} parent=1 // loop_exit
      _
    %208 = vsyncpa [#allocation3], 1
    %s209 = scalar_lea.sflag [#allocation3], 1
    %210 = vsyncpa %s209, 1
    %211 = vsyncpa [#allocation6], 1
    %212 = vsyncpa [#allocation4], 1
    %s213 = scalar_lea.sflag [#allocation4], 1
    %214 = vsyncpa %s213, 1

// kernel: tpu_custom_call.1
$region0: #{tpu_custom_call.1}
  #allocation0 [shape = 'u32[]', space=smem, size = 0x4, offset = 0x4, fixed_abs, tag = 'smem constant byte address 0x4 - core index']
  #allocation1 [shape = 'u32[144,128]{1,0:T(1,128)}', space=vmem, size = 0x12000, scoped, tag = 'internal scratch']
  %s0 = inlined_call_operand.vmem [shape: bf16[2,204,204,8], index: 0, kind: input, shape index: {}]
  %s1 = inlined_call_operand.vmem [shape: bf16[72,64], index: 1, kind: input, shape index: {}]
  %s2 = inlined_call_operand.vmem [shape: f32[1,64], index: 2, kind: input, shape index: {}]
  %s3 = inlined_call_operand.vmem [shape: bf16[2,202,202,64], index: 3, kind: output, shape index: {}]
  %s4 = sld [smem:[#allocation0]]
  $region52: #{tpu_custom_call.1} parent=0
    _
  %s6 = ssub.s32 1, %s4
  %s7 = scalar_select 0, %s6, %s4
  loop: start=0, step=1, limit=4
  $region2: #{tpu_custom_call.1} parent=0 // loop_pre_header
    _
  $region3: #{tpu_custom_call.1} parent=0 // loop_header
    %s9 = sphi 0, %s13
    %p10 = scmp.ge.s32.totalorder %s9, 4
    %s19 = sphi 0, %s21
    %s22 = sphi 0, %s19
    %s23 = sphi 0, %s22
    %s39 = sphi 0, %s23
    %s43 = sphi 0, %s43
    %s45 = sphi 0, %s43
    %s46 = sphi 0, %s45
    %s60 = sphi 0, %s46
    %s64 = sphi 0, %s64
    %s66 = sphi 0, %s64
    %s67 = sphi 0, %s66
    %s81 = sphi 0, %s67
    %s87 = sphi 0, %s89
    %s90 = sphi 0, %s87
    %s91 = sphi 0, %s90
    %s107 = sphi 0, %s91
  $region4: #{tpu_custom_call.1} parent=0 // loop_header_branch
    %12 = sbr.rel (%p10) target = $region8
  $region5: #{tpu_custom_call.1} parent=0 // loop_body
    %s14 = ssub.s32 %s9, 1
    %s15 = ssub.s32 %s9, 2
    %s16 = sadd.s32 %s9, 1
    %s17 = ssub.s32 %s9, %s16
    %p18 = scmp.eq.s32.totalorder %s17, 0
    %s20 = sadd.s32 %s19, 1
    %s21 = scalar_select %p18, %s19, %s20
    %p24 = pneg %p18
    %p25 = scmp.eq.s32.totalorder %s9, 1
    %p26 = por %p24, %p25
    %p27 = scmp.ne.s32.totalorder %s19, %s22
    %p28 = scmp.eq.s32.totalorder %s9, 0
    %p29 = por %p27, %p28
    %p30 = scmp.ne.s32.totalorder %s19, %s22
    %p31 = scmp.eq.s32.totalorder %s14, 1
    %p32 = por %p30, %p31
    %p33 = scmp.ne.s32.totalorder %s22, %s23
    %p34 = scmp.eq.s32.totalorder %s14, 0
    %p35 = por %p33, %p34
    %p36 = scmp.ne.s32.totalorder %s22, %s23
    %p37 = scmp.eq.s32.totalorder %s15, 1
    %p38 = por %p36, %p37
    %p40 = scmp.ne.s32.totalorder %s23, %s39
    %p41 = scmp.eq.s32.totalorder %s15, 0
    %p42 = por %p40, %p41
    %s44 = sadd.s32 %s43, 1
    %p47 = scmp.eq.s32.totalorder %s9, 1
    %p48 = scmp.ne.s32.totalorder %s43, %s45
    %p49 = scmp.eq.s32.totalorder %s9, 0
    %p50 = por %p48, %p49
    %p51 = scmp.ne.s32.totalorder %s43, %s45
    %p52 = scmp.eq.s32.totalorder %s14, 1
    %p53 = por %p51, %p52
    %p54 = scmp.ne.s32.totalorder %s45, %s46
    %p55 = scmp.eq.s32.totalorder %s14, 0
    %p56 = por %p54, %p55
    %p57 = scmp.ne.s32.totalorder %s45, %s46
    %p58 = scmp.eq.s32.totalorder %s15, 1
    %p59 = por %p57, %p58
    %p61 = scmp.ne.s32.totalorder %s46, %s60
    %p62 = scmp.eq.s32.totalorder %s15, 0
    %p63 = por %p61, %p62
    %s65 = sadd.s32 %s64, 1
    %p68 = scmp.eq.s32.totalorder %s9, 1
    %p69 = scmp.ne.s32.totalorder %s64, %s66
    %p70 = scmp.eq.s32.totalorder %s9, 0
    %p71 = por %p69, %p70
    %p72 = scmp.ne.s32.totalorder %s64, %s66
    %p73 = scmp.eq.s32.totalorder %s14, 1
    %p74 = por %p72, %p73
    %p75 = scmp.ne.s32.totalorder %s66, %s67
    %p76 = scmp.eq.s32.totalorder %s14, 0
    %p77 = por %p75, %p76
    %p78 = scmp.ne.s32.totalorder %s66, %s67
    %p79 = scmp.eq.s32.totalorder %s15, 1
    %p80 = por %p78, %p79
    %p82 = scmp.ne.s32.totalorder %s67, %s81
    %p83 = scmp.eq.s32.totalorder %s15, 0
    %p84 = por %p82, %p83
    %s85 = ssub.s32 %s9, %s16
    %p86 = scmp.eq.s32.totalorder %s85, 0
    %s88 = sadd.s32 %s87, 1
    %s89 = scalar_select %p86, %s87, %s88
    %p92 = pneg %p86
    %p93 = scmp.eq.s32.totalorder %s9, 1
    %p94 = por %p92, %p93
    %p95 = scmp.ne.s32.totalorder %s87, %s90
    %p96 = scmp.eq.s32.totalorder %s9, 0
    %p97 = por %p95, %p96
    %p98 = scmp.ne.s32.totalorder %s87, %s90
    %p99 = scmp.eq.s32.totalorder %s14, 1
    %p100 = por %p98, %p99
    %p101 = scmp.ne.s32.totalorder %s90, %s91
    %p102 = scmp.eq.s32.totalorder %s14, 0
    %p103 = por %p101, %p102
    %p104 = scmp.ne.s32.totalorder %s90, %s91
    %p105 = scmp.eq.s32.totalorder %s15, 1
    %p106 = por %p104, %p105
    %p108 = scmp.ne.s32.totalorder %s91, %s107
    %p109 = scmp.eq.s32.totalorder %s15, 0
    %p110 = por %p108, %p109
    %p111 = scmp.le.s32.totalorder 1, %s9
    %p112 = scmp.lt.s32.totalorder %s9, 3
    %p113 = pnand %p111, %p112
    %p114 = pneg %p113
    // Predicated region
    $region9: #{tpu_custom_call.1} parent=5 // pred_check
      _
    $region10: #{tpu_custom_call.1} parent=5 // pred_check_branch
      %116 = sbr.rel (%p113) target = $region12
    $region11: #{tpu_custom_call.1} parent=5 // pred_region
      %s117 = ssub.s32 %s9, 1
      // Predicated region
      $region13: #{tpu_custom_call.1} parent=11 // pred_check
        %p118 = pneg %p56
      $region14: #{tpu_custom_call.1} parent=11 // pred_check_branch
        %120 = sbr.rel (%p118) target = $region16
      $region15: #{tpu_custom_call.1} parent=11 // pred_region
        _
      $region16: #{tpu_custom_call.1} parent=11 // pred_fallthru
        _
      // Predicated region
      $region17: #{tpu_custom_call.1} parent=11 // pred_check
        %p121 = pneg %p77
      $region18: #{tpu_custom_call.1} parent=11 // pred_check_branch
        %123 = sbr.rel (%p121) target = $region20
      $region19: #{tpu_custom_call.1} parent=11 // pred_region
        _
      $region20: #{tpu_custom_call.1} parent=11 // pred_fallthru
        _
    $region12: #{tpu_custom_call.1} parent=5 // pred_fallthru
      _
    %p124 = scmp.lt.s32.totalorder %s9, 2
    // Predicated region
    $region21: #{tpu_custom_call.1} parent=5 // pred_check
      %p125 = pneg %p124
    $region22: #{tpu_custom_call.1} parent=5 // pred_check_branch
      %127 = sbr.rel (%p125) target = $region24
    $region23: #{tpu_custom_call.1} parent=5 // pred_region
      // Predicated region
      $region25: #{tpu_custom_call.1} parent=23 // pred_check
        %p128 = pneg %p29
      $region26: #{tpu_custom_call.1} parent=23 // pred_check_branch
        %130 = sbr.rel (%p128) target = $region28
      $region27: #{tpu_custom_call.1} parent=23 // pred_region
        %p131 = scmp.lt.s32.totalorder %s9, 1
        %s132 = scalar_select %p131, %s9, 1
        %s133 = smul.addr %s132, 5304
        %s134 = smul.addr %s133, 4
        %s135 = scalar_lea.vmem %s0, %s134
      $region28: #{tpu_custom_call.1} parent=23 // pred_fallthru
        _
    $region24: #{tpu_custom_call.1} parent=5 // pred_fallthru
      _
    %p136 = scmp.le.s32.totalorder 1, %s9
    %p137 = scmp.lt.s32.totalorder %s9, 3
    %p138 = pnand %p136, %p137
    %p139 = pneg %p138
    // Predicated region
    $region29: #{tpu_custom_call.1} parent=5 // pred_check
      _
    $region30: #{tpu_custom_call.1} parent=5 // pred_check_branch
      %141 = sbr.rel (%p138) target = $region32
    $region31: #{tpu_custom_call.1} parent=5 // pred_region
      %s142 = ssub.s32 %s9, 1
      %p143 = scmp.lt.s32.totalorder %s14, 1
      %s144 = scalar_select %p143, %s14, 1
      %s145 = smul.addr %s144, 5304
      %s146 = smul.addr %s145, 4
      %s147 = scalar_lea.vmem %s0, %s146
      %p148 = pneg %p35
      %p149 = pneg %p32
      %p150 = pneg %p56
      %p151 = pneg %p53
      %p152 = pneg %p77
      %p153 = pneg %p74
      %p154 = pneg %p103
      %p155 = pneg %p100
      %p156 = scmp.lt.s32.totalorder %s14, 1
      %s157 = scalar_select %p156, %s14, 1
      %s158 = smul.addr %s157, 5252
      %s159 = smul.addr %s158, 4
      %s160 = scalar_lea.vmem %s3, %s159
      %p161 = scmp.lt.s32.totalorder %s14, 1
      %s162 = scalar_select %p161, %s14, 1
      %s163 = smul.addr %s162, 5304
      %s164 = smul.addr %s163, 4
      %s165 = scalar_lea.vmem %s0, %s164
      %p166 = scmp.lt.s32.totalorder %s14, 1
      %s167 = scalar_select %p166, %s14, 1
      %s168 = smul.addr %s167, 5252
      %s169 = smul.addr %s168, 4
      %s170 = scalar_lea.vmem %s3, %s169
      %v172 = vld [vmem:[%s2] sm:$0x1]
      loop: start=0, step=1, limit=202
      $region33: #{tpu_custom_call.1} parent=31 // loop_pre_header
        _
      $region34: #{tpu_custom_call.1} parent=31 // loop_header
        %s174 = sphi 0, %s178
        %p175 = scmp.ge.s32.totalorder %s174, 202
      $region35: #{tpu_custom_call.1} parent=31 // loop_header_branch
        %177 = sbr.rel (%p175) target = $region39
      $region36: #{tpu_custom_call.1} parent=31 // loop_body
        %s179 = smul.u32 %s174, 26
        %s180 = smul.addr %s179, 4
        %s181 = scalar_lea.vmem %s165, %s180
        %v182 = vld [vmem:[%s181] sm:$0xf]
        %v183 = vld [vmem:[%s181 + $0x4] sm:$0xf]
        %v184 = vld [vmem:[%s181 + $0x8] sm:$0xf]
        %v185 = vld [vmem:[%s181 + $0xc] sm:$0xf]
        %v186 = vld [vmem:[%s181 + $0x10] sm:$0xf]
        %v187 = vld [vmem:[%s181 + $0x14] sm:$0xf]
        %v188 = vld [vmem:[%s181 + $0x18] sm:$0xf]
        %v189 = vld [vmem:[%s181 + $0x1c] sm:$0xf]
        %v190 = vld [vmem:[%s181 + $0x20] sm:$0xf]
        %v191 = vld [vmem:[%s181 + $0x24] sm:$0xf]
        %v192 = vld [vmem:[%s181 + $0x28] sm:$0xf]
        %v193 = vld [vmem:[%s181 + $0x2c] sm:$0xf]
        %v194 = vld [vmem:[%s181 + $0x30] sm:$0xf]
        %v195 = vld [vmem:[%s181 + $0x34] sm:$0xf]
        %v196 = vld [vmem:[%s181 + $0x38] sm:$0xf]
        %v197 = vld [vmem:[%s181 + $0x3c] sm:$0xf]
        %v198 = vld [vmem:[%s181 + $0x40] sm:$0xf]
        %v199 = vld [vmem:[%s181 + $0x44] sm:$0xf]
        %v200 = vld [vmem:[%s181 + $0x48] sm:$0xf]
        %v201 = vld [vmem:[%s181 + $0x4c] sm:$0xf]
        %v202 = vld [vmem:[%s181 + $0x50] sm:$0xf]
        %v203 = vld [vmem:[%s181 + $0x54] sm:$0xf]
        %v204 = vld [vmem:[%s181 + $0x58] sm:$0xf]
        %v205 = vld [vmem:[%s181 + $0x5c] sm:$0xf]
        %v206 = vld [vmem:[%s181 + $0x60] sm:$0xf]
        %v207 = vld [vmem:[%s181 + $0x64] sm:$0x3]
        %s208 = sadd.s32 %s174, 1
        %s209 = smul.u32 %s208, 26
        %s210 = smul.addr %s209, 4
        %s211 = scalar_lea.vmem %s165, %s210
        %v212 = vld [vmem:[%s211] sm:$0xf]
        %v213 = vld [vmem:[%s211 + $0x4] sm:$0xf]
        %v214 = vld [vmem:[%s211 + $0x8] sm:$0xf]
        %v215 = vld [vmem:[%s211 + $0xc] sm:$0xf]
        %v216 = vld [vmem:[%s211 + $0x10] sm:$0xf]
        %v217 = vld [vmem:[%s211 + $0x14] sm:$0xf]
        %v218 = vld [vmem:[%s211 + $0x18] sm:$0xf]
        %v219 = vld [vmem:[%s211 + $0x1c] sm:$0xf]
        %v220 = vld [vmem:[%s211 + $0x20] sm:$0xf]
        %v221 = vld [vmem:[%s211 + $0x24] sm:$0xf]
        %v222 = vld [vmem:[%s211 + $0x28] sm:$0xf]
        %v223 = vld [vmem:[%s211 + $0x2c] sm:$0xf]
        %v224 = vld [vmem:[%s211 + $0x30] sm:$0xf]
        %v225 = vld [vmem:[%s211 + $0x34] sm:$0xf]
        %v226 = vld [vmem:[%s211 + $0x38] sm:$0xf]
        %v227 = vld [vmem:[%s211 + $0x3c] sm:$0xf]
        %v228 = vld [vmem:[%s211 + $0x40] sm:$0xf]
        %v229 = vld [vmem:[%s211 + $0x44] sm:$0xf]
        %v230 = vld [vmem:[%s211 + $0x48] sm:$0xf]
        %v231 = vld [vmem:[%s211 + $0x4c] sm:$0xf]
        %v232 = vld [vmem:[%s211 + $0x50] sm:$0xf]
        %v233 = vld [vmem:[%s211 + $0x54] sm:$0xf]
        %v234 = vld [vmem:[%s211 + $0x58] sm:$0xf]
        %v235 = vld [vmem:[%s211 + $0x5c] sm:$0xf]
        %v236 = vld [vmem:[%s211 + $0x60] sm:$0xf]
        %v237 = vld [vmem:[%s211 + $0x64] sm:$0x3]
        %s238 = sadd.s32 %s174, 2
        %s239 = smul.u32 %s238, 26
        %s240 = smul.addr %s239, 4
        %s241 = scalar_lea.vmem %s165, %s240
        %v242 = vld [vmem:[%s241] sm:$0xf]
        %v243 = vld [vmem:[%s241 + $0x4] sm:$0xf]
        %v244 = vld [vmem:[%s241 + $0x8] sm:$0xf]
        %v245 = vld [vmem:[%s241 + $0xc] sm:$0xf]
        %v246 = vld [vmem:[%s241 + $0x10] sm:$0xf]
        %v247 = vld [vmem:[%s241 + $0x14] sm:$0xf]
        %v248 = vld [vmem:[%s241 + $0x18] sm:$0xf]
        %v249 = vld [vmem:[%s241 + $0x1c] sm:$0xf]
        %v250 = vld [vmem:[%s241 + $0x20] sm:$0xf]
        %v251 = vld [vmem:[%s241 + $0x24] sm:$0xf]
        %v252 = vld [vmem:[%s241 + $0x28] sm:$0xf]
        %v253 = vld [vmem:[%s241 + $0x2c] sm:$0xf]
        %v254 = vld [vmem:[%s241 + $0x30] sm:$0xf]
        %v255 = vld [vmem:[%s241 + $0x34] sm:$0xf]
        %v256 = vld [vmem:[%s241 + $0x38] sm:$0xf]
        %v257 = vld [vmem:[%s241 + $0x3c] sm:$0xf]
        %v258 = vld [vmem:[%s241 + $0x40] sm:$0xf]
        %v259 = vld [vmem:[%s241 + $0x44] sm:$0xf]
        %v260 = vld [vmem:[%s241 + $0x48] sm:$0xf]
        %v261 = vld [vmem:[%s241 + $0x4c] sm:$0xf]
        %v262 = vld [vmem:[%s241 + $0x50] sm:$0xf]
        %v263 = vld [vmem:[%s241 + $0x54] sm:$0xf]
        %v264 = vld [vmem:[%s241 + $0x58] sm:$0xf]
        %v265 = vld [vmem:[%s241 + $0x5c] sm:$0xf]
        %v266 = vld [vmem:[%s241 + $0x60] sm:$0xf]
        %v267 = vld [vmem:[%s241 + $0x64] sm:$0x3]
        %v294 = vunpack.c.l.b16 %v182
        %v295 = vunpack.c.l.b16 %v183
        %v296 = vunpack.c.l.b16 %v184
        %v297 = vunpack.c.l.b16 %v185
        %v298 = vunpack.c.l.b16 %v186
        %v299 = vunpack.c.l.b16 %v187
        %v300 = vunpack.c.l.b16 %v188
        %v301 = vunpack.c.l.b16 %v189
        %v302 = vunpack.c.l.b16 %v190
        %v303 = vunpack.c.l.b16 %v191
        %v304 = vunpack.c.l.b16 %v192
        %v305 = vunpack.c.l.b16 %v193
        %v306 = vunpack.c.l.b16 %v194
        %v307 = vunpack.c.l.b16 %v195
        %v308 = vunpack.c.l.b16 %v196
        %v309 = vunpack.c.l.b16 %v197
        %v310 = vunpack.c.l.b16 %v198
        %v311 = vunpack.c.l.b16 %v199
        %v312 = vunpack.c.l.b16 %v200
        %v313 = vunpack.c.l.b16 %v201
        %v314 = vunpack.c.l.b16 %v202
        %v315 = vunpack.c.l.b16 %v203
        %v316 = vunpack.c.l.b16 %v204
        %v317 = vunpack.c.l.b16 %v205
        %v318 = vunpack.c.l.b16 %v206
        %v319 = vunpack.c.l.b16 %v207
        %v320 = vpack.c.b16 %v295, %v294
        %v321 = vpack.c.b16 %v297, %v296
        %v322 = vpack.c.b16 %v299, %v298
        %v323 = vpack.c.b16 %v301, %v300
        %v324 = vpack.c.b16 %v303, %v302
        %v325 = vpack.c.b16 %v305, %v304
        %v326 = vpack.c.b16 %v307, %v306
        %v327 = vpack.c.b16 %v309, %v308
        %v328 = vpack.c.b16 %v311, %v310
        %v329 = vpack.c.b16 %v313, %v312
        %v330 = vpack.c.b16 %v315, %v314
        %v331 = vpack.c.b16 %v317, %v316
        %v332 = vpack.c.b16 %v319, %v318
        %vm333 = vsmask.f32 7424
        %v335 = vshrl.u32 %v320, 16
        %v337 = vshll.u32 %v320, 16
        %v339 = vrot.slane %v337, 1
        %v340 = vor.u32 %v335, %v339
        %v342 = vshll.u32 %v321, 16
        %v344 = vrot.slane %v342, 1
        %v345 = vsel %vm333, %v340, %v344
        %v346 = vshrl.u32 %v321, 16
        %v348 = vor.u32 %v346, %v344
        %v350 = vshll.u32 %v322, 16
        %v352 = vrot.slane %v350, 1
        %v353 = vsel %vm333, %v348, %v352
        %v354 = vshrl.u32 %v322, 16
        %v356 = vor.u32 %v354, %v352
        %v358 = vshll.u32 %v323, 16
        %v360 = vrot.slane %v358, 1
        %v361 = vsel %vm333, %v356, %v360
        %v362 = vshrl.u32 %v323, 16
        %v364 = vor.u32 %v362, %v360
        %v366 = vshll.u32 %v324, 16
        %v368 = vrot.slane %v366, 1
        %v369 = vsel %vm333, %v364, %v368
        %v370 = vshrl.u32 %v324, 16
        %v372 = vor.u32 %v370, %v368
        %v374 = vshll.u32 %v325, 16
        %v376 = vrot.slane %v374, 1
        %v377 = vsel %vm333, %v372, %v376
        %v378 = vshrl.u32 %v325, 16
        %v380 = vor.u32 %v378, %v376
        %v382 = vshll.u32 %v326, 16
        %v384 = vrot.slane %v382, 1
        %v385 = vsel %vm333, %v380, %v384
        %v386 = vshrl.u32 %v326, 16
        %v388 = vor.u32 %v386, %v384
        %v390 = vshll.u32 %v327, 16
        %v392 = vrot.slane %v390, 1
        %v393 = vsel %vm333, %v388, %v392
        %v394 = vshrl.u32 %v327, 16
        %v396 = vor.u32 %v394, %v392
        %v398 = vshll.u32 %v328, 16
        %v400 = vrot.slane %v398, 1
        %v401 = vsel %vm333, %v396, %v400
        %v402 = vshrl.u32 %v328, 16
        %v404 = vor.u32 %v402, %v400
        %v406 = vshll.u32 %v329, 16
        %v408 = vrot.slane %v406, 1
        %v409 = vsel %vm333, %v404, %v408
        %v410 = vshrl.u32 %v329, 16
        %v412 = vor.u32 %v410, %v408
        %v414 = vshll.u32 %v330, 16
        %v416 = vrot.slane %v414, 1
        %v417 = vsel %vm333, %v412, %v416
        %v418 = vshrl.u32 %v330, 16
        %v420 = vor.u32 %v418, %v416
        %v422 = vshll.u32 %v331, 16
        %v424 = vrot.slane %v422, 1
        %v425 = vsel %vm333, %v420, %v424
        %v426 = vshrl.u32 %v331, 16
        %v428 = vor.u32 %v426, %v424
        %v430 = vshll.u32 %v332, 16
        %v432 = vrot.slane %v430, 1
        %v433 = vsel %vm333, %v428, %v432
        %v434 = vshrl.u32 %v332, 16
        %v436 = vor.u32 %v434, %v432
        %437 = vrot.lane.b32.xlu0 %v345, 8
        %v438 = vpop.permute.xlu0 %437
        %439 = vrot.lane.b32.xlu0 %v353, 8
        %v440 = vpop.permute.xlu0 %439
        %441 = vrot.lane.b32.xlu0 %v361, 8
        %v442 = vpop.permute.xlu0 %441
        %443 = vrot.lane.b32.xlu0 %v369, 8
        %v444 = vpop.permute.xlu0 %443
        %445 = vrot.lane.b32.xlu0 %v377, 8
        %v446 = vpop.permute.xlu0 %445
        %447 = vrot.lane.b32.xlu0 %v385, 8
        %v448 = vpop.permute.xlu0 %447
        %449 = vrot.lane.b32.xlu0 %v393, 8
        %v450 = vpop.permute.xlu0 %449
        %451 = vrot.lane.b32.xlu0 %v401, 8
        %v452 = vpop.permute.xlu0 %451
        %453 = vrot.lane.b32.xlu0 %v409, 8
        %v454 = vpop.permute.xlu0 %453
        %455 = vrot.lane.b32.xlu0 %v417, 8
        %v456 = vpop.permute.xlu0 %455
        %457 = vrot.lane.b32.xlu0 %v425, 8
        %v458 = vpop.permute.xlu0 %457
        %459 = vrot.lane.b32.xlu0 %v433, 8
        %v460 = vpop.permute.xlu0 %459
        %461 = vrot.lane.b32.xlu0 %v436, 8
        %v462 = vpop.permute.xlu0 %461
        %vm463 = vcmask 1046528
        %v464 = vrot.slane %v320, 1
        %v465 = vrot.slane %v321, 1
        %v466 = vsel %vm463, %v464, %v465
        %v467 = vrot.slane %v322, 1
        %v468 = vsel %vm463, %v465, %v467
        %v469 = vrot.slane %v323, 1
        %v470 = vsel %vm463, %v467, %v469
        %v471 = vrot.slane %v324, 1
        %v472 = vsel %vm463, %v469, %v471
        %v473 = vrot.slane %v325, 1
        %v474 = vsel %vm463, %v471, %v473
        %v475 = vrot.slane %v326, 1
        %v476 = vsel %vm463, %v473, %v475
        %v477 = vrot.slane %v327, 1
        %v478 = vsel %vm463, %v475, %v477
        %v479 = vrot.slane %v328, 1
        %v480 = vsel %vm463, %v477, %v479
        %v481 = vrot.slane %v329, 1
        %v482 = vsel %vm463, %v479, %v481
        %v483 = vrot.slane %v330, 1
        %v484 = vsel %vm463, %v481, %v483
        %v485 = vrot.slane %v331, 1
        %v486 = vsel %vm463, %v483, %v485
        %v487 = vrot.slane %v332, 1
        %v488 = vsel %vm463, %v485, %v487
        %489 = vrot.lane.b32.xlu0 %v466, 16
        %v490 = vpop.permute.xlu0 %489
        %491 = vrot.lane.b32.xlu0 %v468, 16
        %v492 = vpop.permute.xlu0 %491
        %493 = vrot.lane.b32.xlu0 %v470, 16
        %v494 = vpop.permute.xlu0 %493
        %495 = vrot.lane.b32.xlu0 %v472, 16
        %v496 = vpop.permute.xlu0 %495
        %497 = vrot.lane.b32.xlu0 %v474, 16
        %v498 = vpop.permute.xlu0 %497
        %499 = vrot.lane.b32.xlu0 %v476, 16
        %v500 = vpop.permute.xlu0 %499
        %501 = vrot.lane.b32.xlu0 %v478, 16
        %v502 = vpop.permute.xlu0 %501
        %503 = vrot.lane.b32.xlu0 %v480, 16
        %v504 = vpop.permute.xlu0 %503
        %505 = vrot.lane.b32.xlu0 %v482, 16
        %v506 = vpop.permute.xlu0 %505
        %507 = vrot.lane.b32.xlu0 %v484, 16
        %v508 = vpop.permute.xlu0 %507
        %509 = vrot.lane.b32.xlu0 %v486, 16
        %v510 = vpop.permute.xlu0 %509
        %511 = vrot.lane.b32.xlu0 %v488, 16
        %v512 = vpop.permute.xlu0 %511
        %513 = vrot.lane.b32.xlu0 %v487, 16
        %v514 = vpop.permute.xlu0 %513
        %v541 = vunpack.c.l.b16 %v212
        %v542 = vunpack.c.l.b16 %v213
        %v543 = vunpack.c.l.b16 %v214
        %v544 = vunpack.c.l.b16 %v215
        %v545 = vunpack.c.l.b16 %v216
        %v546 = vunpack.c.l.b16 %v217
        %v547 = vunpack.c.l.b16 %v218
        %v548 = vunpack.c.l.b16 %v219
        %v549 = vunpack.c.l.b16 %v220
        %v550 = vunpack.c.l.b16 %v221
        %v551 = vunpack.c.l.b16 %v222
        %v552 = vunpack.c.l.b16 %v223
        %v553 = vunpack.c.l.b16 %v224
        %v554 = vunpack.c.l.b16 %v225
        %v555 = vunpack.c.l.b16 %v226
        %v556 = vunpack.c.l.b16 %v227
        %v557 = vunpack.c.l.b16 %v228
        %v558 = vunpack.c.l.b16 %v229
        %v559 = vunpack.c.l.b16 %v230
        %v560 = vunpack.c.l.b16 %v231
        %v561 = vunpack.c.l.b16 %v232
        %v562 = vunpack.c.l.b16 %v233
        %v563 = vunpack.c.l.b16 %v234
        %v564 = vunpack.c.l.b16 %v235
        %v565 = vunpack.c.l.b16 %v236
        %v566 = vunpack.c.l.b16 %v237
        %v567 = vpack.c.b16 %v542, %v541
        %v568 = vpack.c.b16 %v544, %v543
        %v569 = vpack.c.b16 %v546, %v545
        %v570 = vpack.c.b16 %v548, %v547
        %v571 = vpack.c.b16 %v550, %v549
        %v572 = vpack.c.b16 %v552, %v551
        %v573 = vpack.c.b16 %v554, %v553
        %v574 = vpack.c.b16 %v556, %v555
        %v575 = vpack.c.b16 %v558, %v557
        %v576 = vpack.c.b16 %v560, %v559
        %v577 = vpack.c.b16 %v562, %v561
        %v578 = vpack.c.b16 %v564, %v563
        %v579 = vpack.c.b16 %v566, %v565
        %580 = vrot.lane.b32.xlu0 %v567, 24
        %v581 = vpop.permute.xlu0 %580
        %582 = vrot.lane.b32.xlu0 %v568, 24
        %v583 = vpop.permute.xlu0 %582
        %584 = vrot.lane.b32.xlu0 %v569, 24
        %v585 = vpop.permute.xlu0 %584
        %586 = vrot.lane.b32.xlu0 %v570, 24
        %v587 = vpop.permute.xlu0 %586
        %588 = vrot.lane.b32.xlu0 %v571, 24
        %v589 = vpop.permute.xlu0 %588
        %590 = vrot.lane.b32.xlu0 %v572, 24
        %v591 = vpop.permute.xlu0 %590
        %592 = vrot.lane.b32.xlu0 %v573, 24
        %v593 = vpop.permute.xlu0 %592
        %594 = vrot.lane.b32.xlu0 %v574, 24
        %v595 = vpop.permute.xlu0 %594
        %596 = vrot.lane.b32.xlu0 %v575, 24
        %v597 = vpop.permute.xlu0 %596
        %598 = vrot.lane.b32.xlu0 %v576, 24
        %v599 = vpop.permute.xlu0 %598
        %600 = vrot.lane.b32.xlu0 %v577, 24
        %v601 = vpop.permute.xlu0 %600
        %602 = vrot.lane.b32.xlu0 %v578, 24
        %v603 = vpop.permute.xlu0 %602
        %604 = vrot.lane.b32.xlu0 %v579, 24
        %v605 = vpop.permute.xlu0 %604
        %v607 = vshrl.u32 %v567, 16
        %v609 = vshll.u32 %v567, 16
        %v611 = vrot.slane %v609, 1
        %v612 = vor.u32 %v607, %v611
        %v614 = vshll.u32 %v568, 16
        %v616 = vrot.slane %v614, 1
        %v617 = vsel %vm333, %v612, %v616
        %v618 = vshrl.u32 %v568, 16
        %v620 = vor.u32 %v618, %v616
        %v622 = vshll.u32 %v569, 16
        %v624 = vrot.slane %v622, 1
        %v625 = vsel %vm333, %v620, %v624
        %v626 = vshrl.u32 %v569, 16
        %v628 = vor.u32 %v626, %v624
        %v630 = vshll.u32 %v570, 16
        %v632 = vrot.slane %v630, 1
        %v633 = vsel %vm333, %v628, %v632
        %v634 = vshrl.u32 %v570, 16
        %v636 = vor.u32 %v634, %v632
        %v638 = vshll.u32 %v571, 16
        %v640 = vrot.slane %v638, 1
        %v641 = vsel %vm333, %v636, %v640
        %v642 = vshrl.u32 %v571, 16
        %v644 = vor.u32 %v642, %v640
        %v646 = vshll.u32 %v572, 16
        %v648 = vrot.slane %v646, 1
        %v649 = vsel %vm333, %v644, %v648
        %v650 = vshrl.u32 %v572, 16
        %v652 = vor.u32 %v650, %v648
        %v654 = vshll.u32 %v573, 16
        %v656 = vrot.slane %v654, 1
        %v657 = vsel %vm333, %v652, %v656
        %v658 = vshrl.u32 %v573, 16
        %v660 = vor.u32 %v658, %v656
        %v662 = vshll.u32 %v574, 16
        %v664 = vrot.slane %v662, 1
        %v665 = vsel %vm333, %v660, %v664
        %v666 = vshrl.u32 %v574, 16
        %v668 = vor.u32 %v666, %v664
        %v670 = vshll.u32 %v575, 16
        %v672 = vrot.slane %v670, 1
        %v673 = vsel %vm333, %v668, %v672
        %v674 = vshrl.u32 %v575, 16
        %v676 = vor.u32 %v674, %v672
        %v678 = vshll.u32 %v576, 16
        %v680 = vrot.slane %v678, 1
        %v681 = vsel %vm333, %v676, %v680
        %v682 = vshrl.u32 %v576, 16
        %v684 = vor.u32 %v682, %v680
        %v686 = vshll.u32 %v577, 16
        %v688 = vrot.slane %v686, 1
        %v689 = vsel %vm333, %v684, %v688
        %v690 = vshrl.u32 %v577, 16
        %v692 = vor.u32 %v690, %v688
        %v694 = vshll.u32 %v578, 16
        %v696 = vrot.slane %v694, 1
        %v697 = vsel %vm333, %v692, %v696
        %v698 = vshrl.u32 %v578, 16
        %v700 = vor.u32 %v698, %v696
        %v702 = vshll.u32 %v579, 16
        %v704 = vrot.slane %v702, 1
        %v705 = vsel %vm333, %v700, %v704
        %v706 = vshrl.u32 %v579, 16
        %v708 = vor.u32 %v706, %v704
        %709 = vrot.lane.b32.xlu0 %v617, 32
        %v710 = vpop.permute.xlu0 %709
        %711 = vrot.lane.b32.xlu0 %v625, 32
        %v712 = vpop.permute.xlu0 %711
        %713 = vrot.lane.b32.xlu0 %v633, 32
        %v714 = vpop.permute.xlu0 %713
        %715 = vrot.lane.b32.xlu0 %v641, 32
        %v716 = vpop.permute.xlu0 %715
        %717 = vrot.lane.b32.xlu0 %v649, 32
        %v718 = vpop.permute.xlu0 %717
        %719 = vrot.lane.b32.xlu0 %v657, 32
        %v720 = vpop.permute.xlu0 %719
        %721 = vrot.lane.b32.xlu0 %v665, 32
        %v722 = vpop.permute.xlu0 %721
        %723 = vrot.lane.b32.xlu0 %v673, 32
        %v724 = vpop.permute.xlu0 %723
        %725 = vrot.lane.b32.xlu0 %v681, 32
        %v726 = vpop.permute.xlu0 %725
        %727 = vrot.lane.b32.xlu0 %v689, 32
        %v728 = vpop.permute.xlu0 %727
        %729 = vrot.lane.b32.xlu0 %v697, 32
        %v730 = vpop.permute.xlu0 %729
        %731 = vrot.lane.b32.xlu0 %v705, 32
        %v732 = vpop.permute.xlu0 %731
        %733 = vrot.lane.b32.xlu0 %v708, 32
        %v734 = vpop.permute.xlu0 %733
        %v735 = vrot.slane %v567, 1
        %v736 = vrot.slane %v568, 1
        %v737 = vsel %vm463, %v735, %v736
        %v738 = vrot.slane %v569, 1
        %v739 = vsel %vm463, %v736, %v738
        %v740 = vrot.slane %v570, 1
        %v741 = vsel %vm463, %v738, %v740
        %v742 = vrot.slane %v571, 1
        %v743 = vsel %vm463, %v740, %v742
        %v744 = vrot.slane %v572, 1
        %v745 = vsel %vm463, %v742, %v744
        %v746 = vrot.slane %v573, 1
        %v747 = vsel %vm463, %v744, %v746
        %v748 = vrot.slane %v574, 1
        %v749 = vsel %vm463, %v746, %v748
        %v750 = vrot.slane %v575, 1
        %v751 = vsel %vm463, %v748, %v750
        %v752 = vrot.slane %v576, 1
        %v753 = vsel %vm463, %v750, %v752
        %v754 = vrot.slane %v577, 1
        %v755 = vsel %vm463, %v752, %v754
        %v756 = vrot.slane %v578, 1
        %v757 = vsel %vm463, %v754, %v756
        %v758 = vrot.slane %v579, 1
        %v759 = vsel %vm463, %v756, %v758
        %760 = vrot.lane.b32.xlu0 %v737, 40
        %v761 = vpop.permute.xlu0 %760
        %762 = vrot.lane.b32.xlu0 %v739, 40
        %v763 = vpop.permute.xlu0 %762
        %764 = vrot.lane.b32.xlu0 %v741, 40
        %v765 = vpop.permute.xlu0 %764
        %766 = vrot.lane.b32.xlu0 %v743, 40
        %v767 = vpop.permute.xlu0 %766
        %768 = vrot.lane.b32.xlu0 %v745, 40
        %v769 = vpop.permute.xlu0 %768
        %770 = vrot.lane.b32.xlu0 %v747, 40
        %v771 = vpop.permute.xlu0 %770
        %772 = vrot.lane.b32.xlu0 %v749, 40
        %v773 = vpop.permute.xlu0 %772
        %774 = vrot.lane.b32.xlu0 %v751, 40
        %v775 = vpop.permute.xlu0 %774
        %776 = vrot.lane.b32.xlu0 %v753, 40
        %v777 = vpop.permute.xlu0 %776
        %778 = vrot.lane.b32.xlu0 %v755, 40
        %v779 = vpop.permute.xlu0 %778
        %780 = vrot.lane.b32.xlu0 %v757, 40
        %v781 = vpop.permute.xlu0 %780
        %782 = vrot.lane.b32.xlu0 %v759, 40
        %v783 = vpop.permute.xlu0 %782
        %784 = vrot.lane.b32.xlu0 %v758, 40
        %v785 = vpop.permute.xlu0 %784
        %v812 = vunpack.c.l.b16 %v242
        %v813 = vunpack.c.l.b16 %v243
        %v814 = vunpack.c.l.b16 %v244
        %v815 = vunpack.c.l.b16 %v245
        %v816 = vunpack.c.l.b16 %v246
        %v817 = vunpack.c.l.b16 %v247
        %v818 = vunpack.c.l.b16 %v248
        %v819 = vunpack.c.l.b16 %v249
        %v820 = vunpack.c.l.b16 %v250
        %v821 = vunpack.c.l.b16 %v251
        %v822 = vunpack.c.l.b16 %v252
        %v823 = vunpack.c.l.b16 %v253
        %v824 = vunpack.c.l.b16 %v254
        %v825 = vunpack.c.l.b16 %v255
        %v826 = vunpack.c.l.b16 %v256
        %v827 = vunpack.c.l.b16 %v257
        %v828 = vunpack.c.l.b16 %v258
        %v829 = vunpack.c.l.b16 %v259
        %v830 = vunpack.c.l.b16 %v260
        %v831 = vunpack.c.l.b16 %v261
        %v832 = vunpack.c.l.b16 %v262
        %v833 = vunpack.c.l.b16 %v263
        %v834 = vunpack.c.l.b16 %v264
        %v835 = vunpack.c.l.b16 %v265
        %v836 = vunpack.c.l.b16 %v266
        %v837 = vunpack.c.l.b16 %v267
        %v838 = vpack.c.b16 %v813, %v812
        %v839 = vpack.c.b16 %v815, %v814
        %v840 = vpack.c.b16 %v817, %v816
        %v841 = vpack.c.b16 %v819, %v818
        %v842 = vpack.c.b16 %v821, %v820
        %v843 = vpack.c.b16 %v823, %v822
        %v844 = vpack.c.b16 %v825, %v824
        %v845 = vpack.c.b16 %v827, %v826
        %v846 = vpack.c.b16 %v829, %v828
        %v847 = vpack.c.b16 %v831, %v830
        %v848 = vpack.c.b16 %v833, %v832
        %v849 = vpack.c.b16 %v835, %v834
        %v850 = vpack.c.b16 %v837, %v836
        %851 = vrot.lane.b32.xlu0 %v838, 48
        %v852 = vpop.permute.xlu0 %851
        %853 = vrot.lane.b32.xlu0 %v839, 48
        %v854 = vpop.permute.xlu0 %853
        %855 = vrot.lane.b32.xlu0 %v840, 48
        %v856 = vpop.permute.xlu0 %855
        %857 = vrot.lane.b32.xlu0 %v841, 48
        %v858 = vpop.permute.xlu0 %857
        %859 = vrot.lane.b32.xlu0 %v842, 48
        %v860 = vpop.permute.xlu0 %859
        %861 = vrot.lane.b32.xlu0 %v843, 48
        %v862 = vpop.permute.xlu0 %861
        %863 = vrot.lane.b32.xlu0 %v844, 48
        %v864 = vpop.permute.xlu0 %863
        %865 = vrot.lane.b32.xlu0 %v845, 48
        %v866 = vpop.permute.xlu0 %865
        %867 = vrot.lane.b32.xlu0 %v846, 48
        %v868 = vpop.permute.xlu0 %867
        %869 = vrot.lane.b32.xlu0 %v847, 48
        %v870 = vpop.permute.xlu0 %869
        %871 = vrot.lane.b32.xlu0 %v848, 48
        %v872 = vpop.permute.xlu0 %871
        %873 = vrot.lane.b32.xlu0 %v849, 48
        %v874 = vpop.permute.xlu0 %873
        %875 = vrot.lane.b32.xlu0 %v850, 48
        %v876 = vpop.permute.xlu0 %875
        %v878 = vshrl.u32 %v838, 16
        %v880 = vshll.u32 %v838, 16
        %v882 = vrot.slane %v880, 1
        %v883 = vor.u32 %v878, %v882
        %v885 = vshll.u32 %v839, 16
        %v887 = vrot.slane %v885, 1
        %v888 = vsel %vm333, %v883, %v887
        %v889 = vshrl.u32 %v839, 16
        %v891 = vor.u32 %v889, %v887
        %v893 = vshll.u32 %v840, 16
        %v895 = vrot.slane %v893, 1
        %v896 = vsel %vm333, %v891, %v895
        %v897 = vshrl.u32 %v840, 16
        %v899 = vor.u32 %v897, %v895
        %v901 = vshll.u32 %v841, 16
        %v903 = vrot.slane %v901, 1
        %v904 = vsel %vm333, %v899, %v903
        %v905 = vshrl.u32 %v841, 16
        %v907 = vor.u32 %v905, %v903
        %v909 = vshll.u32 %v842, 16
        %v911 = vrot.slane %v909, 1
        %v912 = vsel %vm333, %v907, %v911
        %v913 = vshrl.u32 %v842, 16
        %v915 = vor.u32 %v913, %v911
        %v917 = vshll.u32 %v843, 16
        %v919 = vrot.slane %v917, 1
        %v920 = vsel %vm333, %v915, %v919
        %v921 = vshrl.u32 %v843, 16
        %v923 = vor.u32 %v921, %v919
        %v925 = vshll.u32 %v844, 16
        %v927 = vrot.slane %v925, 1
        %v928 = vsel %vm333, %v923, %v927
        %v929 = vshrl.u32 %v844, 16
        %v931 = vor.u32 %v929, %v927
        %v933 = vshll.u32 %v845, 16
        %v935 = vrot.slane %v933, 1
        %v936 = vsel %vm333, %v931, %v935
        %v937 = vshrl.u32 %v845, 16
        %v939 = vor.u32 %v937, %v935
        %v941 = vshll.u32 %v846, 16
        %v943 = vrot.slane %v941, 1
        %v944 = vsel %vm333, %v939, %v943
        %v945 = vshrl.u32 %v846, 16
        %v947 = vor.u32 %v945, %v943
        %v949 = vshll.u32 %v847, 16
        %v951 = vrot.slane %v949, 1
        %v952 = vsel %vm333, %v947, %v951
        %v953 = vshrl.u32 %v847, 16
        %v955 = vor.u32 %v953, %v951
        %v957 = vshll.u32 %v848, 16
        %v959 = vrot.slane %v957, 1
        %v960 = vsel %vm333, %v955, %v959
        %v961 = vshrl.u32 %v848, 16
        %v963 = vor.u32 %v961, %v959
        %v965 = vshll.u32 %v849, 16
        %v967 = vrot.slane %v965, 1
        %v968 = vsel %vm333, %v963, %v967
        %v969 = vshrl.u32 %v849, 16
        %v971 = vor.u32 %v969, %v967
        %v973 = vshll.u32 %v850, 16
        %v975 = vrot.slane %v973, 1
        %v976 = vsel %vm333, %v971, %v975
        %v977 = vshrl.u32 %v850, 16
        %v979 = vor.u32 %v977, %v975
        %980 = vrot.lane.b32.xlu0 %v888, 56
        %v981 = vpop.permute.xlu0 %980
        %982 = vrot.lane.b32.xlu0 %v896, 56
        %v983 = vpop.permute.xlu0 %982
        %984 = vrot.lane.b32.xlu0 %v904, 56
        %v985 = vpop.permute.xlu0 %984
        %986 = vrot.lane.b32.xlu0 %v912, 56
        %v987 = vpop.permute.xlu0 %986
        %988 = vrot.lane.b32.xlu0 %v920, 56
        %v989 = vpop.permute.xlu0 %988
        %990 = vrot.lane.b32.xlu0 %v928, 56
        %v991 = vpop.permute.xlu0 %990
        %992 = vrot.lane.b32.xlu0 %v936, 56
        %v993 = vpop.permute.xlu0 %992
        %994 = vrot.lane.b32.xlu0 %v944, 56
        %v995 = vpop.permute.xlu0 %994
        %996 = vrot.lane.b32.xlu0 %v952, 56
        %v997 = vpop.permute.xlu0 %996
        %998 = vrot.lane.b32.xlu0 %v960, 56
        %v999 = vpop.permute.xlu0 %998
        %1000 = vrot.lane.b32.xlu0 %v968, 56
        %v1001 = vpop.permute.xlu0 %1000
        %1002 = vrot.lane.b32.xlu0 %v976, 56
        %v1003 = vpop.permute.xlu0 %1002
        %1004 = vrot.lane.b32.xlu0 %v979, 56
        %v1005 = vpop.permute.xlu0 %1004
        %v1006 = vrot.slane %v838, 1
        %v1007 = vrot.slane %v839, 1
        %v1008 = vsel %vm463, %v1006, %v1007
        %v1009 = vrot.slane %v840, 1
        %v1010 = vsel %vm463, %v1007, %v1009
        %v1011 = vrot.slane %v841, 1
        %v1012 = vsel %vm463, %v1009, %v1011
        %v1013 = vrot.slane %v842, 1
        %v1014 = vsel %vm463, %v1011, %v1013
        %v1015 = vrot.slane %v843, 1
        %v1016 = vsel %vm463, %v1013, %v1015
        %v1017 = vrot.slane %v844, 1
        %v1018 = vsel %vm463, %v1015, %v1017
        %v1019 = vrot.slane %v845, 1
        %v1020 = vsel %vm463, %v1017, %v1019
        %v1021 = vrot.slane %v846, 1
        %v1022 = vsel %vm463, %v1019, %v1021
        %v1023 = vrot.slane %v847, 1
        %v1024 = vsel %vm463, %v1021, %v1023
        %v1025 = vrot.slane %v848, 1
        %v1026 = vsel %vm463, %v1023, %v1025
        %v1027 = vrot.slane %v849, 1
        %v1028 = vsel %vm463, %v1025, %v1027
        %v1029 = vrot.slane %v850, 1
        %v1030 = vsel %vm463, %v1027, %v1029
        %1031 = vrot.lane.b32.xlu0 %v1008, 64
        %v1032 = vpop.permute.xlu0 %1031
        %1033 = vrot.lane.b32.xlu0 %v1010, 64
        %v1034 = vpop.permute.xlu0 %1033
        %1035 = vrot.lane.b32.xlu0 %v1012, 64
        %v1036 = vpop.permute.xlu0 %1035
        %1037 = vrot.lane.b32.xlu0 %v1014, 64
        %v1038 = vpop.permute.xlu0 %1037
        %1039 = vrot.lane.b32.xlu0 %v1016, 64
        %v1040 = vpop.permute.xlu0 %1039
        %1041 = vrot.lane.b32.xlu0 %v1018, 64
        %v1042 = vpop.permute.xlu0 %1041
        %1043 = vrot.lane.b32.xlu0 %v1020, 64
        %v1044 = vpop.permute.xlu0 %1043
        %1045 = vrot.lane.b32.xlu0 %v1022, 64
        %v1046 = vpop.permute.xlu0 %1045
        %1047 = vrot.lane.b32.xlu0 %v1024, 64
        %v1048 = vpop.permute.xlu0 %1047
        %1049 = vrot.lane.b32.xlu0 %v1026, 64
        %v1050 = vpop.permute.xlu0 %1049
        %1051 = vrot.lane.b32.xlu0 %v1028, 64
        %v1052 = vpop.permute.xlu0 %1051
        %1053 = vrot.lane.b32.xlu0 %v1030, 64
        %v1054 = vpop.permute.xlu0 %1053
        %1055 = vrot.lane.b32.xlu0 %v1029, 64
        %v1056 = vpop.permute.xlu0 %1055
        %vm1057 = vcmask 64512
        %v1059 = vsel %vm1057, %v320, %v438
        %v1061 = vsel %vm1057, %v321, %v440
        %v1063 = vsel %vm1057, %v322, %v442
        %v1065 = vsel %vm1057, %v323, %v444
        %v1067 = vsel %vm1057, %v324, %v446
        %v1069 = vsel %vm1057, %v325, %v448
        %v1071 = vsel %vm1057, %v326, %v450
        %v1073 = vsel %vm1057, %v327, %v452
        %v1075 = vsel %vm1057, %v328, %v454
        %v1077 = vsel %vm1057, %v329, %v456
        %v1079 = vsel %vm1057, %v330, %v458
        %v1081 = vsel %vm1057, %v331, %v460
        %v1083 = vsel %vm1057, %v332, %v462
        %vm1084 = vcmask 130048
        %v1086 = vsel %vm1084, %v1059, %v490
        %v1088 = vsel %vm1084, %v1061, %v492
        %v1090 = vsel %vm1084, %v1063, %v494
        %v1092 = vsel %vm1084, %v1065, %v496
        %v1094 = vsel %vm1084, %v1067, %v498
        %v1096 = vsel %vm1084, %v1069, %v500
        %v1098 = vsel %vm1084, %v1071, %v502
        %v1100 = vsel %vm1084, %v1073, %v504
        %v1102 = vsel %vm1084, %v1075, %v506
        %v1104 = vsel %vm1084, %v1077, %v508
        %v1106 = vsel %vm1084, %v1079, %v510
        %v1108 = vsel %vm1084, %v1081, %v512
        %v1110 = vsel %vm1084, %v1083, %v514
        %vm1111 = vcmask 195584
        %v1113 = vsel %vm1111, %v1086, %v581
        %v1115 = vsel %vm1111, %v1088, %v583
        %v1117 = vsel %vm1111, %v1090, %v585
        %v1119 = vsel %vm1111, %v1092, %v587
        %v1121 = vsel %vm1111, %v1094, %v589
        %v1123 = vsel %vm1111, %v1096, %v591
        %v1125 = vsel %vm1111, %v1098, %v593
        %v1127 = vsel %vm1111, %v1100, %v595
        %v1129 = vsel %vm1111, %v1102, %v597
        %v1131 = vsel %vm1111, %v1104, %v599
        %v1133 = vsel %vm1111, %v1106, %v601
        %v1135 = vsel %vm1111, %v1108, %v603
        %v1137 = vsel %vm1111, %v1110, %v605
        %vm1138 = vcmask 261120
        %v1140 = vsel %vm1138, %v1113, %v710
        %v1142 = vsel %vm1138, %v1115, %v712
        %v1144 = vsel %vm1138, %v1117, %v714
        %v1146 = vsel %vm1138, %v1119, %v716
        %v1148 = vsel %vm1138, %v1121, %v718
        %v1150 = vsel %vm1138, %v1123, %v720
        %v1152 = vsel %vm1138, %v1125, %v722
        %v1154 = vsel %vm1138, %v1127, %v724
        %v1156 = vsel %vm1138, %v1129, %v726
        %v1158 = vsel %vm1138, %v1131, %v728
        %v1160 = vsel %vm1138, %v1133, %v730
        %v1162 = vsel %vm1138, %v1135, %v732
        %v1164 = vsel %vm1138, %v1137, %v734
        %vm1165 = vcmask 326656
        %v1167 = vsel %vm1165, %v1140, %v761
        %v1169 = vsel %vm1165, %v1142, %v763
        %v1171 = vsel %vm1165, %v1144, %v765
        %v1173 = vsel %vm1165, %v1146, %v767
        %v1175 = vsel %vm1165, %v1148, %v769
        %v1177 = vsel %vm1165, %v1150, %v771
        %v1179 = vsel %vm1165, %v1152, %v773
        %v1181 = vsel %vm1165, %v1154, %v775
        %v1183 = vsel %vm1165, %v1156, %v777
        %v1185 = vsel %vm1165, %v1158, %v779
        %v1187 = vsel %vm1165, %v1160, %v781
        %v1189 = vsel %vm1165, %v1162, %v783
        %v1191 = vsel %vm1165, %v1164, %v785
        %vm1192 = vcmask 392192
        %v1194 = vsel %vm1192, %v1167, %v852
        %v1196 = vsel %vm1192, %v1169, %v854
        %v1198 = vsel %vm1192, %v1171, %v856
        %v1200 = vsel %vm1192, %v1173, %v858
        %v1202 = vsel %vm1192, %v1175, %v860
        %v1204 = vsel %vm1192, %v1177, %v862
        %v1206 = vsel %vm1192, %v1179, %v864
        %v1208 = vsel %vm1192, %v1181, %v866
        %v1210 = vsel %vm1192, %v1183, %v868
        %v1212 = vsel %vm1192, %v1185, %v870
        %v1214 = vsel %vm1192, %v1187, %v872
        %v1216 = vsel %vm1192, %v1189, %v874
        %v1218 = vsel %vm1192, %v1191, %v876
        %vm1219 = vcmask 457728
        %v1221 = vsel %vm1219, %v1194, %v981
        %v1223 = vsel %vm1219, %v1196, %v983
        %v1225 = vsel %vm1219, %v1198, %v985
        %v1227 = vsel %vm1219, %v1200, %v987
        %v1229 = vsel %vm1219, %v1202, %v989
        %v1231 = vsel %vm1219, %v1204, %v991
        %v1233 = vsel %vm1219, %v1206, %v993
        %v1235 = vsel %vm1219, %v1208, %v995
        %v1237 = vsel %vm1219, %v1210, %v997
        %v1239 = vsel %vm1219, %v1212, %v999
        %v1241 = vsel %vm1219, %v1214, %v1001
        %v1243 = vsel %vm1219, %v1216, %v1003
        %v1245 = vsel %vm1219, %v1218, %v1005
        %vm1246 = vcmask 523264
        %v1248 = vsel %vm1246, %v1221, %v1032
        %v1250 = vsel %vm1246, %v1223, %v1034
        %v1252 = vsel %vm1246, %v1225, %v1036
        %v1254 = vsel %vm1246, %v1227, %v1038
        %v1256 = vsel %vm1246, %v1229, %v1040
        %v1258 = vsel %vm1246, %v1231, %v1042
        %v1260 = vsel %vm1246, %v1233, %v1044
        %v1262 = vsel %vm1246, %v1235, %v1046
        %v1264 = vsel %vm1246, %v1237, %v1048
        %v1266 = vsel %vm1246, %v1239, %v1050
        %v1268 = vsel %vm1246, %v1241, %v1052
        %v1270 = vsel %vm1246, %v1243, %v1054
        %v1272 = vsel %vm1246, %v1245, %v1056
        %v1273 = vld [vmem:[%s1] sm:$0xf]
        %v1274 = vld [vmem:[%s1 + $0x4] sm:$0xf]
        %v1275 = vld [vmem:[%s1 + $0x8] sm:$0xf]
        %v1276 = vld [vmem:[%s1 + $0xc] sm:$0xf]
        %v1277 = vld [vmem:[%s1 + $0x10] sm:$0xf]
        %v1278 = vld [vmem:[%s1 + $0x14] sm:$0xf]
        %v1279 = vld [vmem:[%s1 + $0x18] sm:$0xf]
        %v1280 = vld [vmem:[%s1 + $0x1c] sm:$0xf]
        %v1281 = vld [vmem:[%s1 + $0x20] sm:$0xf]
        %v1283 = vlaneseq
        %v1284 = vshrl.u32 %v1283, 7
        %v1285 = vsub.s32 0, %v1284
        %v1286 = vrot.slane %v172, %v1285
        %v1297 = vunpack.c.l.b16 %v1273
        %v1298 = vunpack.c.l.b16 %v1274
        %v1299 = vunpack.c.l.b16 %v1275
        %v1300 = vunpack.c.l.b16 %v1276
        %v1301 = vunpack.c.l.b16 %v1277
        %v1302 = vunpack.c.l.b16 %v1278
        %v1303 = vunpack.c.l.b16 %v1279
        %v1304 = vunpack.c.l.b16 %v1280
        %v1305 = vunpack.c.l.b16 %v1281
        %v1306 = vpack.c.b16 %v1298, %v1297
        %v1307 = vpack.c.b16 %v1300, %v1299
        %v1308 = vpack.c.b16 %v1302, %v1301
        %v1309 = vpack.c.b16 %v1304, %v1303
        %v1310 = vpack.c.b16 %v1305, %v1305
        %vm1315 = vcmask 588800
        %v1316 = vsel %vm1315, %v1248, 0
        %v1318 = vsel %vm1315, %v1250, 0
        %v1320 = vsel %vm1315, %v1252, 0
        %v1322 = vsel %vm1315, %v1254, 0
        %v1324 = vsel %vm1315, %v1256, 0
        %v1326 = vsel %vm1315, %v1258, 0
        %v1328 = vsel %vm1315, %v1260, 0
        %v1330 = vsel %vm1315, %v1262, 0
        %v1332 = vsel %vm1315, %v1264, 0
        %v1334 = vsel %vm1315, %v1266, 0
        %v1336 = vsel %vm1315, %v1268, 0
        %v1338 = vsel %vm1315, %v1270, 0
        %v1340 = vsel %vm1315, %v1272, 0
        %vm1342 = vcmask 1043456
        %v1344 = vsel %vm1342, %v1310, 0
        %1346 = vmatprep.subr.bf16.mxu0 0
        %1347 = vmatpush1.bf16.msra.mxu0 0
        %1348 = vmatprep.subr.bf16.mxu0 0
        %1349 = vmatpush1.bf16.msra.mxu0 0
        %1350 = vmatprep.subr.bf16.mxu0 0
        %1351 = vmatpush1.bf16.msra.mxu0 0
        %1352 = vmatprep.subr.bf16.mxu0 0
        %1353 = vmatpush1.bf16.msra.mxu0 %v1344
        %1354 = vmatprep.subr.bf16.mxu0 0
        %1355 = vmatpush1.bf16.msra.mxu0 %v1309
        %1356 = vmatprep.subr.bf16.mxu0 0
        %1357 = vmatpush1.bf16.msra.mxu0 %v1308
        %1358 = vmatprep.subr.bf16.mxu0 0
        %1359 = vmatpush1.bf16.msra.mxu0 %v1307
        %1360 = vmatprep.subr.bf16.mxu0 0
        %1361 = vmatpush1.bf16.msra.mxu0 %v1306
        %1362 = vmatprep.subr.bf16.mxu0 0
        %1363 = vmatpush2.bf16.msra.mxu0 0
        %1364 = vmatprep.subr.bf16.mxu0 0
        %1365 = vmatpush2.bf16.msra.mxu0 0
        %1366 = vmatprep.subr.bf16.mxu0 0
        %1367 = vmatpush2.bf16.msra.mxu0 0
        %1368 = vmatprep.subr.bf16.mxu0 0
        %1369 = vmatpush2.bf16.msra.mxu0 0
        %1370 = vmatprep.subr.bf16.mxu0 0
        %1371 = vmatpush2.bf16.msra.mxu0 0
        %1372 = vmatprep.subr.bf16.mxu0 0
        %1373 = vmatpush2.bf16.msra.mxu0 0
        %1374 = vmatprep.subr.bf16.mxu0 0
        %1375 = vmatpush2.bf16.msra.mxu0 0
        %1376 = vmatprep.subr.bf16.mxu0 0
        %1377 = vmatpush2.bf16.msra.mxu0 0
        %1378 = vmatprep.mubr.bf16.mxu0 0
        %1379 = vmatmul.mubr.bf16.gmra.mxu0 %v1316
        %v1380 = vpop.f32.mrf.mxu0
        %v1381 = vadd.f32 %v1286, %v1380
        %v1382 = vpop.f32.mrf.mxu0
        %v1383 = vpop.f32.mrf.mxu0
        %v1384 = vadd.f32 %v1286, %v1383
        %v1385 = vpop.f32.mrf.mxu0
        %1386 = vmatprep.mubr.bf16.mxu0 0
        %1387 = vmatmul.mubr.bf16.gmra.mxu0 %v1318
        %v1388 = vpop.f32.mrf.mxu0
        %v1389 = vadd.f32 %v1286, %v1388
        %v1390 = vpop.f32.mrf.mxu0
        %v1391 = vpop.f32.mrf.mxu0
        %v1392 = vadd.f32 %v1286, %v1391
        %v1393 = vpop.f32.mrf.mxu0
        %1394 = vmatprep.mubr.bf16.mxu0 0
        %1395 = vmatmul.mubr.bf16.gmra.mxu0 %v1320
        %v1396 = vpop.f32.mrf.mxu0
        %v1397 = vadd.f32 %v1286, %v1396
        %v1398 = vpop.f32.mrf.mxu0
        %v1399 = vpop.f32.mrf.mxu0
        %v1400 = vadd.f32 %v1286, %v1399
        %v1401 = vpop.f32.mrf.mxu0
        %1402 = vmatprep.mubr.bf16.mxu0 0
        %1403 = vmatmul.mubr.bf16.gmra.mxu0 %v1322
        %v1404 = vpop.f32.mrf.mxu0
        %v1405 = vadd.f32 %v1286, %v1404
        %v1406 = vpop.f32.mrf.mxu0
        %v1407 = vpop.f32.mrf.mxu0
        %v1408 = vadd.f32 %v1286, %v1407
        %v1409 = vpop.f32.mrf.mxu0
        %1410 = vmatprep.mubr.bf16.mxu0 0
        %1411 = vmatmul.mubr.bf16.gmra.mxu0 %v1324
        %v1412 = vpop.f32.mrf.mxu0
        %v1413 = vadd.f32 %v1286, %v1412
        %v1414 = vpop.f32.mrf.mxu0
        %v1415 = vpop.f32.mrf.mxu0
        %v1416 = vadd.f32 %v1286, %v1415
        %v1417 = vpop.f32.mrf.mxu0
        %1418 = vmatprep.mubr.bf16.mxu0 0
        %1419 = vmatmul.mubr.bf16.gmra.mxu0 %v1326
        %v1420 = vpop.f32.mrf.mxu0
        %v1421 = vadd.f32 %v1286, %v1420
        %v1422 = vpop.f32.mrf.mxu0
        %v1423 = vpop.f32.mrf.mxu0
        %v1424 = vadd.f32 %v1286, %v1423
        %v1425 = vpop.f32.mrf.mxu0
        %1426 = vmatprep.mubr.bf16.mxu0 0
        %1427 = vmatmul.mubr.bf16.gmra.mxu0 %v1328
        %v1428 = vpop.f32.mrf.mxu0
        %v1429 = vadd.f32 %v1286, %v1428
        %v1430 = vpop.f32.mrf.mxu0
        %v1431 = vpop.f32.mrf.mxu0
        %v1432 = vadd.f32 %v1286, %v1431
        %v1433 = vpop.f32.mrf.mxu0
        %1434 = vmatprep.mubr.bf16.mxu0 0
        %1435 = vmatmul.mubr.bf16.gmra.mxu0 %v1330
        %v1436 = vpop.f32.mrf.mxu0
        %v1437 = vadd.f32 %v1286, %v1436
        %v1438 = vpop.f32.mrf.mxu0
        %v1439 = vpop.f32.mrf.mxu0
        %v1440 = vadd.f32 %v1286, %v1439
        %v1441 = vpop.f32.mrf.mxu0
        %1442 = vmatprep.mubr.bf16.mxu0 0
        %1443 = vmatmul.mubr.bf16.gmra.mxu0 %v1332
        %v1444 = vpop.f32.mrf.mxu0
        %v1445 = vadd.f32 %v1286, %v1444
        %v1446 = vpop.f32.mrf.mxu0
        %v1447 = vpop.f32.mrf.mxu0
        %v1448 = vadd.f32 %v1286, %v1447
        %v1449 = vpop.f32.mrf.mxu0
        %1450 = vmatprep.mubr.bf16.mxu0 0
        %1451 = vmatmul.mubr.bf16.gmra.mxu0 %v1334
        %v1452 = vpop.f32.mrf.mxu0
        %v1453 = vadd.f32 %v1286, %v1452
        %v1454 = vpop.f32.mrf.mxu0
        %v1455 = vpop.f32.mrf.mxu0
        %v1456 = vadd.f32 %v1286, %v1455
        %v1457 = vpop.f32.mrf.mxu0
        %1458 = vmatprep.mubr.bf16.mxu0 0
        %1459 = vmatmul.mubr.bf16.gmra.mxu0 %v1336
        %v1460 = vpop.f32.mrf.mxu0
        %v1461 = vadd.f32 %v1286, %v1460
        %v1462 = vpop.f32.mrf.mxu0
        %v1463 = vpop.f32.mrf.mxu0
        %v1464 = vadd.f32 %v1286, %v1463
        %v1465 = vpop.f32.mrf.mxu0
        %1466 = vmatprep.mubr.bf16.mxu0 0
        %1467 = vmatmul.mubr.bf16.gmra.mxu0 %v1338
        %v1468 = vpop.f32.mrf.mxu0
        %v1469 = vadd.f32 %v1286, %v1468
        %v1470 = vpop.f32.mrf.mxu0
        %v1471 = vpop.f32.mrf.mxu0
        %v1472 = vadd.f32 %v1286, %v1471
        %v1473 = vpop.f32.mrf.mxu0
        %1474 = vmatprep.mubr.bf16.mxu0 0
        %1475 = vmatmul.mubr.bf16.gmra.mxu0 %v1340
        %v1476 = vpop.f32.mrf.mxu0
        %v1477 = vadd.f32 %v1286, %v1476
        %v1478 = vpop.f32.mrf.mxu0
        %v1479 = vpop.f32.mrf.mxu0
        %v1480 = vadd.f32 %v1286, %v1479
        %v1481 = vpop.f32.mrf.mxu0
        %1482 = vdwg.mxu0
        %v1483 = vmax.f32 %v1381, 0.0
        %v1484 = vmax.f32 %v1384, 0.0
        %v1485 = vmax.f32 %v1389, 0.0
        %v1486 = vmax.f32 %v1392, 0.0
        %v1487 = vmax.f32 %v1397, 0.0
        %v1488 = vmax.f32 %v1400, 0.0
        %v1489 = vmax.f32 %v1405, 0.0
        %v1490 = vmax.f32 %v1408, 0.0
        %v1491 = vmax.f32 %v1413, 0.0
        %v1492 = vmax.f32 %v1416, 0.0
        %v1493 = vmax.f32 %v1421, 0.0
        %v1494 = vmax.f32 %v1424, 0.0
        %v1495 = vmax.f32 %v1429, 0.0
        %v1496 = vmax.f32 %v1432, 0.0
        %v1497 = vmax.f32 %v1437, 0.0
        %v1498 = vmax.f32 %v1440, 0.0
        %v1499 = vmax.f32 %v1445, 0.0
        %v1500 = vmax.f32 %v1448, 0.0
        %v1501 = vmax.f32 %v1453, 0.0
        %v1502 = vmax.f32 %v1456, 0.0
        %v1503 = vmax.f32 %v1461, 0.0
        %v1504 = vmax.f32 %v1464, 0.0
        %v1505 = vmax.f32 %v1469, 0.0
        %v1506 = vmax.f32 %v1472, 0.0
        %v1507 = vmax.f32 %v1477, 0.0
        %v1508 = vmax.f32 %v1480, 0.0
        %v1509 = vpack.c.bf16 %v1484, %v1483
        %v1510 = vpack.c.bf16 %v1486, %v1485
        %v1511 = vpack.c.bf16 %v1488, %v1487
        %v1512 = vpack.c.bf16 %v1490, %v1489
        %v1513 = vpack.c.bf16 %v1492, %v1491
        %v1514 = vpack.c.bf16 %v1494, %v1493
        %v1515 = vpack.c.bf16 %v1496, %v1495
        %v1516 = vpack.c.bf16 %v1498, %v1497
        %v1517 = vpack.c.bf16 %v1500, %v1499
        %v1518 = vpack.c.bf16 %v1502, %v1501
        %v1519 = vpack.c.bf16 %v1504, %v1503
        %v1520 = vpack.c.bf16 %v1506, %v1505
        %v1521 = vpack.c.bf16 %v1508, %v1507
        %v1535 = vunpack.c.l.b16 %v1509
        %v1536 = vunpack.c.h.b16 %v1509
        %v1537 = vunpack.c.l.b16 %v1510
        %v1538 = vunpack.c.h.b16 %v1510
        %v1539 = vunpack.c.l.b16 %v1511
        %v1540 = vunpack.c.h.b16 %v1511
        %v1541 = vunpack.c.l.b16 %v1512
        %v1542 = vunpack.c.h.b16 %v1512
        %v1543 = vunpack.c.l.b16 %v1513
        %v1544 = vunpack.c.h.b16 %v1513
        %v1545 = vunpack.c.l.b16 %v1514
        %v1546 = vunpack.c.h.b16 %v1514
        %v1547 = vunpack.c.l.b16 %v1515
        %v1548 = vunpack.c.h.b16 %v1515
        %v1549 = vunpack.c.l.b16 %v1516
        %v1550 = vunpack.c.h.b16 %v1516
        %v1551 = vunpack.c.l.b16 %v1517
        %v1552 = vunpack.c.h.b16 %v1517
        %v1553 = vunpack.c.l.b16 %v1518
        %v1554 = vunpack.c.h.b16 %v1518
        %v1555 = vunpack.c.l.b16 %v1519
        %v1556 = vunpack.c.h.b16 %v1519
        %v1557 = vunpack.c.l.b16 %v1520
        %v1558 = vunpack.c.h.b16 %v1520
        %v1559 = vunpack.c.l.b16 %v1521
        %v1560 = vunpack.c.h.b16 %v1521
        %v1561 = vpack.c.b16 %v1535, %v1535
        %v1562 = vpack.c.b16 %v1536, %v1536
        %v1563 = vpack.c.b16 %v1537, %v1537
        %v1564 = vpack.c.b16 %v1538, %v1538
        %v1565 = vpack.c.b16 %v1539, %v1539
        %v1566 = vpack.c.b16 %v1540, %v1540
        %v1567 = vpack.c.b16 %v1541, %v1541
        %v1568 = vpack.c.b16 %v1542, %v1542
        %v1569 = vpack.c.b16 %v1543, %v1543
        %v1570 = vpack.c.b16 %v1544, %v1544
        %v1571 = vpack.c.b16 %v1545, %v1545
        %v1572 = vpack.c.b16 %v1546, %v1546
        %v1573 = vpack.c.b16 %v1547, %v1547
        %v1574 = vpack.c.b16 %v1548, %v1548
        %v1575 = vpack.c.b16 %v1549, %v1549
        %v1576 = vpack.c.b16 %v1550, %v1550
        %v1577 = vpack.c.b16 %v1551, %v1551
        %v1578 = vpack.c.b16 %v1552, %v1552
        %v1579 = vpack.c.b16 %v1553, %v1553
        %v1580 = vpack.c.b16 %v1554, %v1554
        %v1581 = vpack.c.b16 %v1555, %v1555
        %v1582 = vpack.c.b16 %v1556, %v1556
        %v1583 = vpack.c.b16 %v1557, %v1557
        %v1584 = vpack.c.b16 %v1558, %v1558
        %v1585 = vpack.c.b16 %v1559, %v1559
        %v1586 = vpack.c.b16 %v1560, %v1560
        %s1613 = smul.addr %s179, 4
        %s1614 = scalar_lea.vmem %s170, %s1613
        %vm1615 = vcmask 519168
        %1616 = vst.msk [vmem:[%s1614] sm:$0xf] %vm1615, %v1561
        %1617 = vst.msk [vmem:[%s1614 + $0x4] sm:$0xf] %vm1615, %v1562
        %1618 = vst.msk [vmem:[%s1614 + $0x8] sm:$0xf] %vm1615, %v1563
        %1619 = vst.msk [vmem:[%s1614 + $0xc] sm:$0xf] %vm1615, %v1564
        %1620 = vst.msk [vmem:[%s1614 + $0x10] sm:$0xf] %vm1615, %v1565
        %1621 = vst.msk [vmem:[%s1614 + $0x14] sm:$0xf] %vm1615, %v1566
        %1622 = vst.msk [vmem:[%s1614 + $0x18] sm:$0xf] %vm1615, %v1567
        %1623 = vst.msk [vmem:[%s1614 + $0x1c] sm:$0xf] %vm1615, %v1568
        %1624 = vst.msk [vmem:[%s1614 + $0x20] sm:$0xf] %vm1615, %v1569
        %1625 = vst.msk [vmem:[%s1614 + $0x24] sm:$0xf] %vm1615, %v1570
        %1626 = vst.msk [vmem:[%s1614 + $0x28] sm:$0xf] %vm1615, %v1571
        %1627 = vst.msk [vmem:[%s1614 + $0x2c] sm:$0xf] %vm1615, %v1572
        %1628 = vst.msk [vmem:[%s1614 + $0x30] sm:$0xf] %vm1615, %v1573
        %1629 = vst.msk [vmem:[%s1614 + $0x34] sm:$0xf] %vm1615, %v1574
        %1630 = vst.msk [vmem:[%s1614 + $0x38] sm:$0xf] %vm1615, %v1575
        %1631 = vst.msk [vmem:[%s1614 + $0x3c] sm:$0xf] %vm1615, %v1576
        %1632 = vst.msk [vmem:[%s1614 + $0x40] sm:$0xf] %vm1615, %v1577
        %1633 = vst.msk [vmem:[%s1614 + $0x44] sm:$0xf] %vm1615, %v1578
        %1634 = vst.msk [vmem:[%s1614 + $0x48] sm:$0xf] %vm1615, %v1579
        %1635 = vst.msk [vmem:[%s1614 + $0x4c] sm:$0xf] %vm1615, %v1580
        %1636 = vst.msk [vmem:[%s1614 + $0x50] sm:$0xf] %vm1615, %v1581
        %1637 = vst.msk [vmem:[%s1614 + $0x54] sm:$0xf] %vm1615, %v1582
        %1638 = vst.msk [vmem:[%s1614 + $0x58] sm:$0xf] %vm1615, %v1583
        %1639 = vst.msk [vmem:[%s1614 + $0x5c] sm:$0xf] %vm1615, %v1584
        %1640 = vst.msk [vmem:[%s1614 + $0x60] sm:$0xf] %vm1615, %v1585
        %vm1641 = vcmask 516096
        %1642 = vst.msk [vmem:[%s1614 + $0x64] sm:$0x1] %vm1641, %v1586
      $region37: #{tpu_custom_call.1} parent=31 // loop_footer
        %s178 = sadd.s32 1, %s174
      $region38: #{tpu_custom_call.1} parent=31 // loop_footer_branch
        %173 = sbr.rel target = $region34
      $region39: #{tpu_custom_call.1} parent=31 // loop_exit
        _
      %p1643 = scmp.lt.s32.totalorder %s14, 1
      %s1644 = scalar_select %p1643, %s14, 1
      %s1645 = smul.addr %s1644, 5252
      %s1646 = smul.addr %s1645, 4
      %s1647 = scalar_lea.vmem %s3, %s1646
      // Predicated region
      $region40: #{tpu_custom_call.1} parent=31 // pred_check
        %p1648 = pneg %p100
      $region41: #{tpu_custom_call.1} parent=31 // pred_check_branch
        %1650 = sbr.rel (%p1648) target = $region43
      $region42: #{tpu_custom_call.1} parent=31 // pred_region
        _
      $region43: #{tpu_custom_call.1} parent=31 // pred_fallthru
        _
    $region32: #{tpu_custom_call.1} parent=5 // pred_fallthru
      _
    %p1651 = scmp.le.s32.totalorder 2, %s9
    // Predicated region
    $region44: #{tpu_custom_call.1} parent=5 // pred_check
      %p1652 = pneg %p1651
    $region45: #{tpu_custom_call.1} parent=5 // pred_check_branch
      %1654 = sbr.rel (%p1652) target = $region47
    $region46: #{tpu_custom_call.1} parent=5 // pred_region
      %s1655 = ssub.s32 %s9, 2
      // Predicated region
      $region48: #{tpu_custom_call.1} parent=46 // pred_check
        %p1656 = pneg %p106
      $region49: #{tpu_custom_call.1} parent=46 // pred_check_branch
        %1658 = sbr.rel (%p1656) target = $region51
      $region50: #{tpu_custom_call.1} parent=46 // pred_region
        %p1659 = scmp.lt.s32.totalorder %s15, 1
        %s1660 = scalar_select %p1659, %s15, 1
        %s1661 = smul.addr %s1660, 5252
        %s1662 = smul.addr %s1661, 4
        %s1663 = scalar_lea.vmem %s3, %s1662
      $region51: #{tpu_custom_call.1} parent=46 // pred_fallthru
        _
    $region47: #{tpu_custom_call.1} parent=5 // pred_fallthru
      _
  $region6: #{tpu_custom_call.1} parent=0 // loop_footer
    %s13 = sadd.s32 1, %s9
  $region7: #{tpu_custom_call.1} parent=0 // loop_footer_branch
    %8 = sbr.rel target = $region3
  $region8: #{tpu_custom_call.1} parent=0 // loop_exit
    _

</llo_original>
